<compile_context>
chip_gen: v6e
topology: v6e:2x2x1
jax: 0.10.0
libtpu: 0.0.40
codegen_flags: <defaults>
</compile_context>

<pallas_src>
import functools

import jax
import jax.numpy as jnp
from jax.experimental import pallas as pl
from jax.experimental.pallas import tpu as pltpu

BN_EPS = 1e-5


def _branch_body(x_ref, w_ref, p_ref, o_ref, eps):
    """One skip branch: y = BN_train(Conv1x1(x)); conv bias omitted (cancels under BN).

    x_ref: (C_in, N*HW)   skip feature map, channels on sublanes, N*H*W on lanes
    w_ref: (C_out, C_in)  1x1 conv weight
    p_ref: (C_out, 2)     packed BN params: [:, 0] = gamma, [:, 1] = beta
    o_ref: (C_out, N*HW)  output block (lane-dense for x4/x3/x2)
    """
    inv_count = 1.0 / float(x_ref.shape[1])

    # Single MXU matmul for the whole branch (batch folded into the lane axis).
    y = jnp.dot(w_ref[...], x_ref[...], preferred_element_type=jnp.float32)  # (C_out, NHW)

    # One-pass batch statistics (biased variance, as PyTorch training-mode BN uses).
    s1 = jnp.sum(y, axis=1, keepdims=True)        # (C_out, 1)
    s2 = jnp.sum(y * y, axis=1, keepdims=True)    # (C_out, 1)
    mean = s1 * inv_count
    var = s2 * inv_count - mean * mean

    gamma = p_ref[:, 0:1]
    beta = p_ref[:, 1:2]
    scale = gamma * jax.lax.rsqrt(var + eps)      # (C_out, 1)
    shift = beta - mean * scale

    o_ref[...] = (y * scale + shift).astype(o_ref.dtype)


def _fused_kernel(*refs, eps, n_branches):
    """refs = (x_0, w_0, p_0, ..., x_{B-1}, w_{B-1}, p_{B-1}, o_0, ..., o_{B-1})."""
    ins = refs[: 3 * n_branches]
    outs = refs[3 * n_branches:]
    for i in range(n_branches):
        _branch_body(ins[3 * i], ins[3 * i + 1], ins[3 * i + 2], outs[i], eps)


@jax.jit
def _feature_extractor_forward(params, x5, x4, x3, x2):
    """All four skip branches in ONE fused pallas_call.

    params: list of (w, bconv, gamma, beta) per branch (bconv unused in-kernel: it
            cancels under training-mode BN).
    x*:     NCHW skip feature maps.
    Returns NCHW outputs (x5_skip, x4_skip, x3_skip, x2_skip).
    """
    xs = (x5, x4, x3, x2)

    kernel_ins = []
    in_specs = []
    out_shapes = []
    out_specs = []
    for x, (w, _bconv, gamma, beta) in zip(xs, params):
        n, c_in, h, wdt = x.shape
        c_out = w.shape[0]
        nhw = n * h * wdt

        # (N, C_in, H, W) -> (C_in, N*HW): one tiny XLA transpose, buys lane-dense
        # tiles + a single MXU issue per branch inside the kernel.
        x2d = jnp.transpose(x, (1, 0, 2, 3)).reshape(c_in, nhw)
        # Packed BN params, one small DMA instead of several (C_out, 1) refs.
        p = jnp.stack([gamma, beta], axis=1).astype(jnp.float32)  # (C_out, 2)

        kernel_ins += [x2d, w, p]
        in_specs += [
            pl.BlockSpec((c_in, nhw), lambda i: (0, 0)),
            pl.BlockSpec((c_out, c_in), lambda i: (0, 0)),
            pl.BlockSpec((c_out, 2), lambda i: (0, 0)),
        ]
        out_shapes.append(jax.ShapeDtypeStruct((c_out, nhw), jnp.float32))
        out_specs.append(pl.BlockSpec((c_out, nhw), lambda i: (0, 0)))

    outs2d = pl.pallas_call(
        functools.partial(_fused_kernel, eps=BN_EPS, n_branches=len(xs)),
        out_shape=tuple(out_shapes),
        grid=(1,),
        in_specs=in_specs,
        out_specs=tuple(out_specs),
        compiler_params=pltpu.CompilerParams(
            dimension_semantics=("arbitrary",),
        ),
    )(*kernel_ins)

    results = []
    for o2d, x, (w, _b, _g, _bt) in zip(outs2d, xs, params):
        n, _, h, wdt = x.shape
        c_out = w.shape[0]
        # (C_out, N*HW) -> (N, C_out, H, W)
        results.append(jnp.transpose(o2d.reshape(c_out, n, h, wdt), (1, 0, 2, 3)))
    return tuple(results)


def _ref_conv1x1_bn(x_nchw, w, b, gamma, beta):
    """Pure-JAX reference (includes the conv bias; the kernel relies on it cancelling)."""
    y = jnp.einsum("nchw,oc->nohw", x_nchw.astype(jnp.float32), w.astype(jnp.float32))
    y = y + b.reshape(1, -1, 1, 1)
    mean = jnp.mean(y, axis=(0, 2, 3), keepdims=True)
    var = jnp.mean((y - mean) ** 2, axis=(0, 2, 3), keepdims=True)
    y = (y - mean) * jax.lax.rsqrt(var + BN_EPS)
    return y * gamma.reshape(1, -1, 1, 1) + beta.reshape(1, -1, 1, 1)


class FeatureExtractorPallas:
    """Pallas port of FeatureExtractor (kernel_size=1, base_model='resnet34')."""

    def __init__(self, hidden_size=32, base_model="resnet34", key=jax.random.PRNGKey(0)):
        assert base_model == "resnet34"
        skip_dims_in = [512, 256, 128, 64, 64]
        self.hidden_size = hidden_size
        out_dims = [hidden_size, hidden_size, hidden_size // 2, hidden_size // 4]
        in_dims = skip_dims_in[:4]

        self.params = []
        keys = jax.random.split(key, len(in_dims) * 4)
        for i, (ci, co) in enumerate(zip(in_dims, out_dims)):
            # Deterministic synthetic init (matches PyTorch Conv2d fan-in scaling).
            bound = 1.0 / jnp.sqrt(jnp.float32(ci))
            w = jax.random.uniform(keys[4 * i], (co, ci), jnp.float32, -bound, bound)
            bconv = jax.random.uniform(keys[4 * i + 1], (co,), jnp.float32, -bound, bound)
            # PyTorch BatchNorm2d default init is gamma=1, beta=0; randomize slightly
            # here purely to exercise the affine path in the correctness check.
            gamma = 1.0 + 0.1 * jax.random.normal(keys[4 * i + 2], (co,), jnp.float32)
            beta = 0.1 * jax.random.normal(keys[4 * i + 3], (co,), jnp.float32)
            self.params.append((w, bconv, gamma, beta))

    def __call__(self, x5, x4, x3, x2):
        # -> (x5_skip, x4_skip, x3_skip, x2_skip)
        return _feature_extractor_forward(self.params, x5, x4, x3, x2)


if __name__ == "__main__":
    key = jax.random.PRNGKey(0)
    k_model, k5, k4, k3, k2 = jax.random.split(key, 5)

    # Synthetic backbone skip features (NCHW), resnet34 channel layout, small spatial sizes.
    x5 = jax.random.normal(k5, (2, 512, 4, 4), jnp.float32)
    x4 = jax.random.normal(k4, (2, 256, 8, 8), jnp.float32)
    x3 = jax.random.normal(k3, (2, 128, 16, 16), jnp.float32)
    x2 = jax.random.normal(k2, (2, 64, 32, 32), jnp.float32)

    model = FeatureExtractorPallas(hidden_size=32, base_model="resnet34", key=k_model)

    outs = model(x5, x4, x3, x2)
    outs = jax.block_until_ready(outs)

    # Correctness check against a pure-JAX reference (reference applies the conv bias,
    # proving the in-kernel bias-cancellation under training-mode BN).
    feats = (x5, x4, x3, x2)
    for got, feat, p in zip(outs, feats, model.params):
        want = _ref_conv1x1_bn(feat, *p)
        assert got.shape == want.shape, (got.shape, want.shape)
        assert jnp.allclose(got, want, rtol=1e-2, atol=1e-2), "mismatch vs reference"

    print("KERNEL_OK")
</pallas_src>

<mosaic_0001>
module attributes {stable_mosaic.version = 11 : i64} {
  func.func @_fused_kernel(%arg0: i32, %arg1: memref<512x32xf32, #tpu.memory_space<vmem>>, %arg2: memref<32x512xf32, #tpu.memory_space<vmem>>, %arg3: memref<32x2xf32, #tpu.memory_space<vmem>>, %arg4: memref<256x128xf32, #tpu.memory_space<vmem>>, %arg5: memref<32x256xf32, #tpu.memory_space<vmem>>, %arg6: memref<32x2xf32, #tpu.memory_space<vmem>>, %arg7: memref<128x512xf32, #tpu.memory_space<vmem>>, %arg8: memref<16x128xf32, #tpu.memory_space<vmem>>, %arg9: memref<16x2xf32, #tpu.memory_space<vmem>>, %arg10: memref<64x2048xf32, #tpu.memory_space<vmem>>, %arg11: memref<8x64xf32, #tpu.memory_space<vmem>>, %arg12: memref<8x2xf32, #tpu.memory_space<vmem>>, %arg13: memref<32x32xf32, #tpu.memory_space<vmem>>, %arg14: memref<32x128xf32, #tpu.memory_space<vmem>>, %arg15: memref<16x512xf32, #tpu.memory_space<vmem>>, %arg16: memref<8x2048xf32, #tpu.memory_space<vmem>>) attributes {dimension_semantics = [#tpu.dimension_semantics<arbitrary>], iteration_bounds = array<i64: 1>, scalar_prefetch = 0 : i64, scratch_operands = 0 : i64, tpu.core_type = #tpu.core_type<tc>, window_params = [{pipeline_mode = #tpu.pipeline_mode<synchronous>, transform_indices = @transform_0, window_bounds = array<i64: 512, 32>}, {pipeline_mode = #tpu.pipeline_mode<synchronous>, transform_indices = @transform_1, window_bounds = array<i64: 32, 512>}, {pipeline_mode = #tpu.pipeline_mode<synchronous>, transform_indices = @transform_2, window_bounds = array<i64: 32, 2>}, {pipeline_mode = #tpu.pipeline_mode<synchronous>, transform_indices = @transform_3, window_bounds = array<i64: 256, 128>}, {pipeline_mode = #tpu.pipeline_mode<synchronous>, transform_indices = @transform_4, window_bounds = array<i64: 32, 256>}, {pipeline_mode = #tpu.pipeline_mode<synchronous>, transform_indices = @transform_5, window_bounds = array<i64: 32, 2>}, {pipeline_mode = #tpu.pipeline_mode<synchronous>, transform_indices = @transform_6, window_bounds = array<i64: 128, 512>}, {pipeline_mode = #tpu.pipeline_mode<synchronous>, transform_indices = @transform_7, window_bounds = array<i64: 16, 128>}, {pipeline_mode = #tpu.pipeline_mode<synchronous>, transform_indices = @transform_8, window_bounds = array<i64: 16, 2>}, {pipeline_mode = #tpu.pipeline_mode<synchronous>, transform_indices = @transform_9, window_bounds = array<i64: 64, 2048>}, {pipeline_mode = #tpu.pipeline_mode<synchronous>, transform_indices = @transform_10, window_bounds = array<i64: 8, 64>}, {pipeline_mode = #tpu.pipeline_mode<synchronous>, transform_indices = @transform_11, window_bounds = array<i64: 8, 2>}, {pipeline_mode = #tpu.pipeline_mode<synchronous>, transform_indices = @transform_12, window_bounds = array<i64: 32, 32>}, {pipeline_mode = #tpu.pipeline_mode<synchronous>, transform_indices = @transform_13, window_bounds = array<i64: 32, 128>}, {pipeline_mode = #tpu.pipeline_mode<synchronous>, transform_indices = @transform_14, window_bounds = array<i64: 16, 512>}, {pipeline_mode = #tpu.pipeline_mode<synchronous>, transform_indices = @transform_15, window_bounds = array<i64: 8, 2048>}]} {
    %c0 = arith.constant 0 : index
    %c0_0 = arith.constant 0 : index
    %0 = vector.load %arg2[%c0, %c0_0] : memref<32x512xf32, #tpu.memory_space<vmem>>, vector<32x512xf32>
    %c0_1 = arith.constant 0 : index
    %c0_2 = arith.constant 0 : index
    %1 = vector.load %arg1[%c0_1, %c0_2] : memref<512x32xf32, #tpu.memory_space<vmem>>, vector<512x32xf32>
    %cst = arith.constant dense<0.000000e+00> : vector<32x32xf32>
    %2 = tpu.matmul %0, %1, %cst {dimension_numbers = #tpu.dot_dimension_numbers<[1], [0], [0], [1], [0, 0, 1, 1], [], []>} : vector<32x512xf32>, vector<512x32xf32>, vector<32x32xf32> -> vector<32x32xf32>
    %cst_3 = arith.constant dense<0.000000e+00> : vector<32xf32>
    %3 = vector.multi_reduction <add>, %2, %cst_3 [1] : vector<32x32xf32> to vector<32xf32>
    %4 = vector.shape_cast %3 : vector<32xf32> to vector<32x1xf32>
    %5 = arith.mulf %2, %2 : vector<32x32xf32>
    %cst_4 = arith.constant dense<0.000000e+00> : vector<32xf32>
    %6 = vector.multi_reduction <add>, %5, %cst_4 [1] : vector<32x32xf32> to vector<32xf32>
    %7 = vector.shape_cast %6 : vector<32xf32> to vector<32x1xf32>
    %cst_5 = arith.constant 3.125000e-02 : f32
    %8 = vector.broadcast %cst_5 : f32 to vector<32x1xf32>
    %9 = arith.mulf %4, %8 : vector<32x1xf32>
    %cst_6 = arith.constant 3.125000e-02 : f32
    %10 = vector.broadcast %cst_6 : f32 to vector<32x1xf32>
    %11 = arith.mulf %7, %10 : vector<32x1xf32>
    %12 = arith.mulf %9, %9 : vector<32x1xf32>
    %13 = arith.subf %11, %12 : vector<32x1xf32>
    %c0_7 = arith.constant 0 : index
    %c0_8 = arith.constant 0 : index
    %14 = vector.load %arg3[%c0_7, %c0_8] : memref<32x2xf32, #tpu.memory_space<vmem>>, vector<32x1xf32>
    %c0_9 = arith.constant 0 : index
    %c1 = arith.constant 1 : index
    %15 = vector.load %arg3[%c0_9, %c1] : memref<32x2xf32, #tpu.memory_space<vmem>>, vector<32x1xf32>
    %cst_10 = arith.constant 9.99999974E-6 : f32
    %16 = vector.broadcast %cst_10 : f32 to vector<32x1xf32>
    %17 = arith.addf %13, %16 : vector<32x1xf32>
    %18 = math.rsqrt %17 : vector<32x1xf32>
    %19 = arith.mulf %14, %18 : vector<32x1xf32>
    %20 = arith.mulf %9, %19 : vector<32x1xf32>
    %21 = arith.subf %15, %20 : vector<32x1xf32>
    %22 = vector.broadcast %19 : vector<32x1xf32> to vector<32x32xf32>
    %23 = arith.mulf %2, %22 : vector<32x32xf32>
    %24 = vector.broadcast %21 : vector<32x1xf32> to vector<32x32xf32>
    %25 = arith.addf %23, %24 : vector<32x32xf32>
    %c0_11 = arith.constant 0 : index
    %c0_12 = arith.constant 0 : index
    %26 = vector.load %arg13[%c0_11, %c0_12] : memref<32x32xf32, #tpu.memory_space<vmem>>, vector<32x32xf32>
    tpu.vector_store %arg13[%c0_11, %c0_12], %25 {strides = array<i32>} : memref<32x32xf32, #tpu.memory_space<vmem>>, vector<32x32xf32>,
    %c0_13 = arith.constant 0 : index
    %c0_14 = arith.constant 0 : index
    %27 = vector.load %arg5[%c0_13, %c0_14] : memref<32x256xf32, #tpu.memory_space<vmem>>, vector<32x256xf32>
    %c0_15 = arith.constant 0 : index
    %c0_16 = arith.constant 0 : index
    %28 = vector.load %arg4[%c0_15, %c0_16] : memref<256x128xf32, #tpu.memory_space<vmem>>, vector<256x128xf32>
    %cst_17 = arith.constant dense<0.000000e+00> : vector<32x128xf32>
    %29 = tpu.matmul %27, %28, %cst_17 {dimension_numbers = #tpu.dot_dimension_numbers<[1], [0], [0], [1], [0, 0, 1, 1], [], []>} : vector<32x256xf32>, vector<256x128xf32>, vector<32x128xf32> -> vector<32x128xf32>
    %cst_18 = arith.constant dense<0.000000e+00> : vector<32xf32>
    %30 = vector.multi_reduction <add>, %29, %cst_18 [1] : vector<32x128xf32> to vector<32xf32>
    %31 = vector.shape_cast %30 : vector<32xf32> to vector<32x1xf32>
    %32 = arith.mulf %29, %29 : vector<32x128xf32>
    %cst_19 = arith.constant dense<0.000000e+00> : vector<32xf32>
    %33 = vector.multi_reduction <add>, %32, %cst_19 [1] : vector<32x128xf32> to vector<32xf32>
    %34 = vector.shape_cast %33 : vector<32xf32> to vector<32x1xf32>
    %cst_20 = arith.constant 7.812500e-03 : f32
    %35 = vector.broadcast %cst_20 : f32 to vector<32x1xf32>
    %36 = arith.mulf %31, %35 : vector<32x1xf32>
    %cst_21 = arith.constant 7.812500e-03 : f32
    %37 = vector.broadcast %cst_21 : f32 to vector<32x1xf32>
    %38 = arith.mulf %34, %37 : vector<32x1xf32>
    %39 = arith.mulf %36, %36 : vector<32x1xf32>
    %40 = arith.subf %38, %39 : vector<32x1xf32>
    %c0_22 = arith.constant 0 : index
    %c0_23 = arith.constant 0 : index
    %41 = vector.load %arg6[%c0_22, %c0_23] : memref<32x2xf32, #tpu.memory_space<vmem>>, vector<32x1xf32>
    %c0_24 = arith.constant 0 : index
    %c1_25 = arith.constant 1 : index
    %42 = vector.load %arg6[%c0_24, %c1_25] : memref<32x2xf32, #tpu.memory_space<vmem>>, vector<32x1xf32>
    %cst_26 = arith.constant 9.99999974E-6 : f32
    %43 = vector.broadcast %cst_26 : f32 to vector<32x1xf32>
    %44 = arith.addf %40, %43 : vector<32x1xf32>
    %45 = math.rsqrt %44 : vector<32x1xf32>
    %46 = arith.mulf %41, %45 : vector<32x1xf32>
    %47 = arith.mulf %36, %46 : vector<32x1xf32>
    %48 = arith.subf %42, %47 : vector<32x1xf32>
    %49 = vector.broadcast %46 : vector<32x1xf32> to vector<32x128xf32>
    %50 = arith.mulf %29, %49 : vector<32x128xf32>
    %51 = vector.broadcast %48 : vector<32x1xf32> to vector<32x128xf32>
    %52 = arith.addf %50, %51 : vector<32x128xf32>
    %c0_27 = arith.constant 0 : index
    %c0_28 = arith.constant 0 : index
    %53 = vector.load %arg14[%c0_27, %c0_28] : memref<32x128xf32, #tpu.memory_space<vmem>>, vector<32x128xf32>
    tpu.vector_store %arg14[%c0_27, %c0_28], %52 {strides = array<i32>} : memref<32x128xf32, #tpu.memory_space<vmem>>, vector<32x128xf32>,
    %c0_29 = arith.constant 0 : index
    %c0_30 = arith.constant 0 : index
    %54 = vector.load %arg8[%c0_29, %c0_30] : memref<16x128xf32, #tpu.memory_space<vmem>>, vector<16x128xf32>
    %c0_31 = arith.constant 0 : index
    %c0_32 = arith.constant 0 : index
    %55 = vector.load %arg7[%c0_31, %c0_32] : memref<128x512xf32, #tpu.memory_space<vmem>>, vector<128x512xf32>
    %cst_33 = arith.constant dense<0.000000e+00> : vector<16x512xf32>
    %56 = tpu.matmul %54, %55, %cst_33 {dimension_numbers = #tpu.dot_dimension_numbers<[1], [0], [0], [1], [0, 0, 1, 1], [], []>} : vector<16x128xf32>, vector<128x512xf32>, vector<16x512xf32> -> vector<16x512xf32>
    %cst_34 = arith.constant dense<0.000000e+00> : vector<16xf32>
    %57 = vector.multi_reduction <add>, %56, %cst_34 [1] : vector<16x512xf32> to vector<16xf32>
    %58 = vector.shape_cast %57 : vector<16xf32> to vector<16x1xf32>
    %59 = arith.mulf %56, %56 : vector<16x512xf32>
    %cst_35 = arith.constant dense<0.000000e+00> : vector<16xf32>
    %60 = vector.multi_reduction <add>, %59, %cst_35 [1] : vector<16x512xf32> to vector<16xf32>
    %61 = vector.shape_cast %60 : vector<16xf32> to vector<16x1xf32>
    %cst_36 = arith.constant 0.001953125 : f32
    %62 = vector.broadcast %cst_36 : f32 to vector<16x1xf32>
    %63 = arith.mulf %58, %62 : vector<16x1xf32>
    %cst_37 = arith.constant 0.001953125 : f32
    %64 = vector.broadcast %cst_37 : f32 to vector<16x1xf32>
    %65 = arith.mulf %61, %64 : vector<16x1xf32>
    %66 = arith.mulf %63, %63 : vector<16x1xf32>
    %67 = arith.subf %65, %66 : vector<16x1xf32>
    %c0_38 = arith.constant 0 : index
    %c0_39 = arith.constant 0 : index
    %68 = vector.load %arg9[%c0_38, %c0_39] : memref<16x2xf32, #tpu.memory_space<vmem>>, vector<16x1xf32>
    %c0_40 = arith.constant 0 : index
    %c1_41 = arith.constant 1 : index
    %69 = vector.load %arg9[%c0_40, %c1_41] : memref<16x2xf32, #tpu.memory_space<vmem>>, vector<16x1xf32>
    %cst_42 = arith.constant 9.99999974E-6 : f32
    %70 = vector.broadcast %cst_42 : f32 to vector<16x1xf32>
    %71 = arith.addf %67, %70 : vector<16x1xf32>
    %72 = math.rsqrt %71 : vector<16x1xf32>
    %73 = arith.mulf %68, %72 : vector<16x1xf32>
    %74 = arith.mulf %63, %73 : vector<16x1xf32>
    %75 = arith.subf %69, %74 : vector<16x1xf32>
    %76 = vector.broadcast %73 : vector<16x1xf32> to vector<16x512xf32>
    %77 = arith.mulf %56, %76 : vector<16x512xf32>
    %78 = vector.broadcast %75 : vector<16x1xf32> to vector<16x512xf32>
    %79 = arith.addf %77, %78 : vector<16x512xf32>
    %c0_43 = arith.constant 0 : index
    %c0_44 = arith.constant 0 : index
    %80 = vector.load %arg15[%c0_43, %c0_44] : memref<16x512xf32, #tpu.memory_space<vmem>>, vector<16x512xf32>
    tpu.vector_store %arg15[%c0_43, %c0_44], %79 {strides = array<i32>} : memref<16x512xf32, #tpu.memory_space<vmem>>, vector<16x512xf32>,
    %c0_45 = arith.constant 0 : index
    %c0_46 = arith.constant 0 : index
    %81 = vector.load %arg11[%c0_45, %c0_46] : memref<8x64xf32, #tpu.memory_space<vmem>>, vector<8x64xf32>
    %c0_47 = arith.constant 0 : index
    %c0_48 = arith.constant 0 : index
    %82 = vector.load %arg10[%c0_47, %c0_48] : memref<64x2048xf32, #tpu.memory_space<vmem>>, vector<64x2048xf32>
    %cst_49 = arith.constant dense<0.000000e+00> : vector<8x2048xf32>
    %83 = tpu.matmul %81, %82, %cst_49 {dimension_numbers = #tpu.dot_dimension_numbers<[1], [0], [0], [1], [0, 0, 1, 1], [], []>} : vector<8x64xf32>, vector<64x2048xf32>, vector<8x2048xf32> -> vector<8x2048xf32>
    %cst_50 = arith.constant dense<0.000000e+00> : vector<8xf32>
    %84 = vector.multi_reduction <add>, %83, %cst_50 [1] : vector<8x2048xf32> to vector<8xf32>
    %85 = vector.shape_cast %84 : vector<8xf32> to vector<8x1xf32>
    %86 = arith.mulf %83, %83 : vector<8x2048xf32>
    %cst_51 = arith.constant dense<0.000000e+00> : vector<8xf32>
    %87 = vector.multi_reduction <add>, %86, %cst_51 [1] : vector<8x2048xf32> to vector<8xf32>
    %88 = vector.shape_cast %87 : vector<8xf32> to vector<8x1xf32>
    %cst_52 = arith.constant 4.8828125E-4 : f32
    %89 = vector.broadcast %cst_52 : f32 to vector<8x1xf32>
    %90 = arith.mulf %85, %89 : vector<8x1xf32>
    %cst_53 = arith.constant 4.8828125E-4 : f32
    %91 = vector.broadcast %cst_53 : f32 to vector<8x1xf32>
    %92 = arith.mulf %88, %91 : vector<8x1xf32>
    %93 = arith.mulf %90, %90 : vector<8x1xf32>
    %94 = arith.subf %92, %93 : vector<8x1xf32>
    %c0_54 = arith.constant 0 : index
    %c0_55 = arith.constant 0 : index
    %95 = vector.load %arg12[%c0_54, %c0_55] : memref<8x2xf32, #tpu.memory_space<vmem>>, vector<8x1xf32>
    %c0_56 = arith.constant 0 : index
    %c1_57 = arith.constant 1 : index
    %96 = vector.load %arg12[%c0_56, %c1_57] : memref<8x2xf32, #tpu.memory_space<vmem>>, vector<8x1xf32>
    %cst_58 = arith.constant 9.99999974E-6 : f32
    %97 = vector.broadcast %cst_58 : f32 to vector<8x1xf32>
    %98 = arith.addf %94, %97 : vector<8x1xf32>
    %99 = math.rsqrt %98 : vector<8x1xf32>
    %100 = arith.mulf %95, %99 : vector<8x1xf32>
    %101 = arith.mulf %90, %100 : vector<8x1xf32>
    %102 = arith.subf %96, %101 : vector<8x1xf32>
    %103 = vector.broadcast %100 : vector<8x1xf32> to vector<8x2048xf32>
    %104 = arith.mulf %83, %103 : vector<8x2048xf32>
    %105 = vector.broadcast %102 : vector<8x1xf32> to vector<8x2048xf32>
    %106 = arith.addf %104, %105 : vector<8x2048xf32>
    %c0_59 = arith.constant 0 : index
    %c0_60 = arith.constant 0 : index
    %107 = vector.load %arg16[%c0_59, %c0_60] : memref<8x2048xf32, #tpu.memory_space<vmem>>, vector<8x2048xf32>
    tpu.vector_store %arg16[%c0_59, %c0_60], %106 {strides = array<i32>} : memref<8x2048xf32, #tpu.memory_space<vmem>>, vector<8x2048xf32>,
    return
  }
  func.func @transform_0(%arg0: i32) -> (i32, i32) {
    %c0_i32 = arith.constant 0 : i32
    %c0_i32_0 = arith.constant 0 : i32
    %c0_i32_1 = arith.constant 0 : i32
    return %c0_i32, %c0_i32_0 : i32, i32
  }
  func.func @transform_1(%arg0: i32) -> (i32, i32) {
    %c0_i32 = arith.constant 0 : i32
    %c0_i32_0 = arith.constant 0 : i32
    %c0_i32_1 = arith.constant 0 : i32
    return %c0_i32, %c0_i32_0 : i32, i32
  }
  func.func @transform_2(%arg0: i32) -> (i32, i32) {
    %c0_i32 = arith.constant 0 : i32
    %c0_i32_0 = arith.constant 0 : i32
    %c0_i32_1 = arith.constant 0 : i32
    return %c0_i32, %c0_i32_0 : i32, i32
  }
  func.func @transform_3(%arg0: i32) -> (i32, i32) {
    %c0_i32 = arith.constant 0 : i32
    %c0_i32_0 = arith.constant 0 : i32
    %c0_i32_1 = arith.constant 0 : i32
    return %c0_i32, %c0_i32_0 : i32, i32
  }
  func.func @transform_4(%arg0: i32) -> (i32, i32) {
    %c0_i32 = arith.constant 0 : i32
    %c0_i32_0 = arith.constant 0 : i32
    %c0_i32_1 = arith.constant 0 : i32
    return %c0_i32, %c0_i32_0 : i32, i32
  }
  func.func @transform_5(%arg0: i32) -> (i32, i32) {
    %c0_i32 = arith.constant 0 : i32
    %c0_i32_0 = arith.constant 0 : i32
    %c0_i32_1 = arith.constant 0 : i32
    return %c0_i32, %c0_i32_0 : i32, i32
  }
  func.func @transform_6(%arg0: i32) -> (i32, i32) {
    %c0_i32 = arith.constant 0 : i32
    %c0_i32_0 = arith.constant 0 : i32
    %c0_i32_1 = arith.constant 0 : i32
    return %c0_i32, %c0_i32_0 : i32, i32
  }
  func.func @transform_7(%arg0: i32) -> (i32, i32) {
    %c0_i32 = arith.constant 0 : i32
    %c0_i32_0 = arith.constant 0 : i32
    %c0_i32_1 = arith.constant 0 : i32
    return %c0_i32, %c0_i32_0 : i32, i32
  }
  func.func @transform_8(%arg0: i32) -> (i32, i32) {
    %c0_i32 = arith.constant 0 : i32
    %c0_i32_0 = arith.constant 0 : i32
    %c0_i32_1 = arith.constant 0 : i32
    return %c0_i32, %c0_i32_0 : i32, i32
  }
  func.func @transform_9(%arg0: i32) -> (i32, i32) {
    %c0_i32 = arith.constant 0 : i32
    %c0_i32_0 = arith.constant 0 : i32
    %c0_i32_1 = arith.constant 0 : i32
    return %c0_i32, %c0_i32_0 : i32, i32
  }
  func.func @transform_10(%arg0: i32) -> (i32, i32) {
    %c0_i32 = arith.constant 0 : i32
    %c0_i32_0 = arith.constant 0 : i32
    %c0_i32_1 = arith.constant 0 : i32
    return %c0_i32, %c0_i32_0 : i32, i32
  }
  func.func @transform_11(%arg0: i32) -> (i32, i32) {
    %c0_i32 = arith.constant 0 : i32
    %c0_i32_0 = arith.constant 0 : i32
    %c0_i32_1 = arith.constant 0 : i32
    return %c0_i32, %c0_i32_0 : i32, i32
  }
  func.func @transform_12(%arg0: i32) -> (i32, i32) {
    %c0_i32 = arith.constant 0 : i32
    %c0_i32_0 = arith.constant 0 : i32
    %c0_i32_1 = arith.constant 0 : i32
    return %c0_i32, %c0_i32_0 : i32, i32
  }
  func.func @transform_13(%arg0: i32) -> (i32, i32) {
    %c0_i32 = arith.constant 0 : i32
    %c0_i32_0 = arith.constant 0 : i32
    %c0_i32_1 = arith.constant 0 : i32
    return %c0_i32, %c0_i32_0 : i32, i32
  }
  func.func @transform_14(%arg0: i32) -> (i32, i32) {
    %c0_i32 = arith.constant 0 : i32
    %c0_i32_0 = arith.constant 0 : i32
    %c0_i32_1 = arith.constant 0 : i32
    return %c0_i32, %c0_i32_0 : i32, i32
  }
  func.func @transform_15(%arg0: i32) -> (i32, i32) {
    %c0_i32 = arith.constant 0 : i32
    %c0_i32_0 = arith.constant 0 : i32
    %c0_i32_1 = arith.constant 0 : i32
    return %c0_i32, %c0_i32_0 : i32, i32
  }
}

</mosaic_0001>

<llo_original>
// kernel: _feature_extractor_forward.1
$region0: #{_feature_extractor_forward.1}
  #allocation0 [shape = 'u32[]', space=smem, size = 0x4, offset = 0x4, fixed_abs, tag = 'smem constant byte address 0x4 - core index']
  #allocation1 [shape = 'u32[144,128]{1,0:T(1,128)}', space=vmem, size = 0x12000, scoped, tag = 'internal scratch']
  %s0 = inlined_call_operand.vmem [shape: f32[512,32], index: 0, kind: input, shape index: {}]
  %s1 = inlined_call_operand.vmem [shape: f32[32,512], index: 1, kind: input, shape index: {}]
  %s2 = inlined_call_operand.vmem [shape: f32[32,2], index: 2, kind: input, shape index: {}]
  %s3 = inlined_call_operand.vmem [shape: f32[256,128], index: 3, kind: input, shape index: {}]
  %s4 = inlined_call_operand.vmem [shape: f32[32,256], index: 4, kind: input, shape index: {}]
  %s5 = inlined_call_operand.vmem [shape: f32[32,2], index: 5, kind: input, shape index: {}]
  %s6 = inlined_call_operand.vmem [shape: f32[128,512], index: 6, kind: input, shape index: {}]
  %s7 = inlined_call_operand.vmem [shape: f32[16,128], index: 7, kind: input, shape index: {}]
  %s8 = inlined_call_operand.vmem [shape: f32[16,2], index: 8, kind: input, shape index: {}]
  %s9 = inlined_call_operand.vmem [shape: f32[64,2048], index: 9, kind: input, shape index: {}]
  %s10 = inlined_call_operand.vmem [shape: f32[8,64], index: 10, kind: input, shape index: {}]
  %s11 = inlined_call_operand.vmem [shape: f32[8,2], index: 11, kind: input, shape index: {}]
  %s12 = inlined_call_operand.vmem [shape: f32[32,32], index: 12, kind: output, shape index: {0}]
  %s13 = inlined_call_operand.vmem [shape: f32[32,128], index: 13, kind: output, shape index: {1}]
  %s14 = inlined_call_operand.vmem [shape: f32[16,512], index: 14, kind: output, shape index: {2}]
  %s15 = inlined_call_operand.vmem [shape: f32[8,2048], index: 15, kind: output, shape index: {3}]
  %16 = xla_tuple %s12, %s13, %s14, %s15
  %s17 = sld [smem:[#allocation0]]
  $region82: #{_feature_extractor_forward.1} parent=0
    _
  %s19 = ssub.s32 1, %s17
  %s20 = scalar_select 0, %s19, %s17
  // Predicated region
  $region2: #{_feature_extractor_forward.1} parent=0 // pred_check
    _
  $region3: #{_feature_extractor_forward.1} parent=0 // pred_check_branch
    %22 = sbr.rel (0) target = $region5
  $region4: #{_feature_extractor_forward.1} parent=0 // pred_region
    _
  $region5: #{_feature_extractor_forward.1} parent=0 // pred_fallthru
    _
  // Predicated region
  $region6: #{_feature_extractor_forward.1} parent=0 // pred_check
    _
  $region7: #{_feature_extractor_forward.1} parent=0 // pred_check_branch
    %24 = sbr.rel (0) target = $region9
  $region8: #{_feature_extractor_forward.1} parent=0 // pred_region
    _
  $region9: #{_feature_extractor_forward.1} parent=0 // pred_fallthru
    _
  // Predicated region
  $region10: #{_feature_extractor_forward.1} parent=0 // pred_check
    _
  $region11: #{_feature_extractor_forward.1} parent=0 // pred_check_branch
    %26 = sbr.rel (0) target = $region13
  $region12: #{_feature_extractor_forward.1} parent=0 // pred_region
    _
  $region13: #{_feature_extractor_forward.1} parent=0 // pred_fallthru
    _
  // Predicated region
  $region14: #{_feature_extractor_forward.1} parent=0 // pred_check
    _
  $region15: #{_feature_extractor_forward.1} parent=0 // pred_check_branch
    %28 = sbr.rel (0) target = $region17
  $region16: #{_feature_extractor_forward.1} parent=0 // pred_region
    _
  $region17: #{_feature_extractor_forward.1} parent=0 // pred_fallthru
    _
  // Predicated region
  $region18: #{_feature_extractor_forward.1} parent=0 // pred_check
    _
  $region19: #{_feature_extractor_forward.1} parent=0 // pred_check_branch
    %30 = sbr.rel (0) target = $region21
  $region20: #{_feature_extractor_forward.1} parent=0 // pred_region
    _
  $region21: #{_feature_extractor_forward.1} parent=0 // pred_fallthru
    _
  // Predicated region
  $region22: #{_feature_extractor_forward.1} parent=0 // pred_check
    _
  $region23: #{_feature_extractor_forward.1} parent=0 // pred_check_branch
    %32 = sbr.rel (0) target = $region25
  $region24: #{_feature_extractor_forward.1} parent=0 // pred_region
    _
  $region25: #{_feature_extractor_forward.1} parent=0 // pred_fallthru
    _
  // Predicated region
  $region26: #{_feature_extractor_forward.1} parent=0 // pred_check
    _
  $region27: #{_feature_extractor_forward.1} parent=0 // pred_check_branch
    %34 = sbr.rel (0) target = $region29
  $region28: #{_feature_extractor_forward.1} parent=0 // pred_region
    _
  $region29: #{_feature_extractor_forward.1} parent=0 // pred_fallthru
    _
  // Predicated region
  $region30: #{_feature_extractor_forward.1} parent=0 // pred_check
    _
  $region31: #{_feature_extractor_forward.1} parent=0 // pred_check_branch
    %36 = sbr.rel (0) target = $region33
  $region32: #{_feature_extractor_forward.1} parent=0 // pred_region
    _
  $region33: #{_feature_extractor_forward.1} parent=0 // pred_fallthru
    _
  // Predicated region
  $region34: #{_feature_extractor_forward.1} parent=0 // pred_check
    _
  $region35: #{_feature_extractor_forward.1} parent=0 // pred_check_branch
    %38 = sbr.rel (0) target = $region37
  $region36: #{_feature_extractor_forward.1} parent=0 // pred_region
    _
  $region37: #{_feature_extractor_forward.1} parent=0 // pred_fallthru
    _
  // Predicated region
  $region38: #{_feature_extractor_forward.1} parent=0 // pred_check
    _
  $region39: #{_feature_extractor_forward.1} parent=0 // pred_check_branch
    %40 = sbr.rel (0) target = $region41
  $region40: #{_feature_extractor_forward.1} parent=0 // pred_region
    _
  $region41: #{_feature_extractor_forward.1} parent=0 // pred_fallthru
    _
  // Predicated region
  $region42: #{_feature_extractor_forward.1} parent=0 // pred_check
    _
  $region43: #{_feature_extractor_forward.1} parent=0 // pred_check_branch
    %42 = sbr.rel (0) target = $region45
  $region44: #{_feature_extractor_forward.1} parent=0 // pred_region
    _
  $region45: #{_feature_extractor_forward.1} parent=0 // pred_fallthru
    _
  // Predicated region
  $region46: #{_feature_extractor_forward.1} parent=0 // pred_check
    _
  $region47: #{_feature_extractor_forward.1} parent=0 // pred_check_branch
    %44 = sbr.rel (0) target = $region49
  $region48: #{_feature_extractor_forward.1} parent=0 // pred_region
    _
  $region49: #{_feature_extractor_forward.1} parent=0 // pred_fallthru
    _
  %v45 = vld [vmem:[%s1] sm:$0xff]
  %v46 = vld [vmem:[%s1 + $0x8] sm:$0xff]
  %v47 = vld [vmem:[%s1 + $0x10] sm:$0xff]
  %v48 = vld [vmem:[%s1 + $0x18] sm:$0xff]
  %v49 = vld [vmem:[%s1 + $0x20] sm:$0xff]
  %v50 = vld [vmem:[%s1 + $0x28] sm:$0xff]
  %v51 = vld [vmem:[%s1 + $0x30] sm:$0xff]
  %v52 = vld [vmem:[%s1 + $0x38] sm:$0xff]
  %v53 = vld [vmem:[%s1 + $0x40] sm:$0xff]
  %v54 = vld [vmem:[%s1 + $0x48] sm:$0xff]
  %v55 = vld [vmem:[%s1 + $0x50] sm:$0xff]
  %v56 = vld [vmem:[%s1 + $0x58] sm:$0xff]
  %v57 = vld [vmem:[%s1 + $0x60] sm:$0xff]
  %v58 = vld [vmem:[%s1 + $0x68] sm:$0xff]
  %v59 = vld [vmem:[%s1 + $0x70] sm:$0xff]
  %v60 = vld [vmem:[%s1 + $0x78] sm:$0xff]
  %v61 = vld [vmem:[%s0] sm:$0xff]
  %v62 = vld [vmem:[%s0 + $0x8] sm:$0xff]
  %v63 = vld [vmem:[%s0 + $0x10] sm:$0xff]
  %v64 = vld [vmem:[%s0 + $0x18] sm:$0xff]
  %v65 = vld [vmem:[%s0 + $0x20] sm:$0xff]
  %v66 = vld [vmem:[%s0 + $0x28] sm:$0xff]
  %v67 = vld [vmem:[%s0 + $0x30] sm:$0xff]
  %v68 = vld [vmem:[%s0 + $0x38] sm:$0xff]
  %v69 = vld [vmem:[%s0 + $0x40] sm:$0xff]
  %v70 = vld [vmem:[%s0 + $0x48] sm:$0xff]
  %v71 = vld [vmem:[%s0 + $0x50] sm:$0xff]
  %v72 = vld [vmem:[%s0 + $0x58] sm:$0xff]
  %v73 = vld [vmem:[%s0 + $0x60] sm:$0xff]
  %v74 = vld [vmem:[%s0 + $0x68] sm:$0xff]
  %v75 = vld [vmem:[%s0 + $0x70] sm:$0xff]
  %v76 = vld [vmem:[%s0 + $0x78] sm:$0xff]
  %v77 = vld [vmem:[%s0 + $0x80] sm:$0xff]
  %v78 = vld [vmem:[%s0 + $0x88] sm:$0xff]
  %v79 = vld [vmem:[%s0 + $0x90] sm:$0xff]
  %v80 = vld [vmem:[%s0 + $0x98] sm:$0xff]
  %v81 = vld [vmem:[%s0 + $0xa0] sm:$0xff]
  %v82 = vld [vmem:[%s0 + $0xa8] sm:$0xff]
  %v83 = vld [vmem:[%s0 + $0xb0] sm:$0xff]
  %v84 = vld [vmem:[%s0 + $0xb8] sm:$0xff]
  %v85 = vld [vmem:[%s0 + $0xc0] sm:$0xff]
  %v86 = vld [vmem:[%s0 + $0xc8] sm:$0xff]
  %v87 = vld [vmem:[%s0 + $0xd0] sm:$0xff]
  %v88 = vld [vmem:[%s0 + $0xd8] sm:$0xff]
  %v89 = vld [vmem:[%s0 + $0xe0] sm:$0xff]
  %v90 = vld [vmem:[%s0 + $0xe8] sm:$0xff]
  %v91 = vld [vmem:[%s0 + $0xf0] sm:$0xff]
  %v92 = vld [vmem:[%s0 + $0xf8] sm:$0xff]
  %v93 = vld [vmem:[%s0 + $0x100] sm:$0xff]
  %v94 = vld [vmem:[%s0 + $0x108] sm:$0xff]
  %v95 = vld [vmem:[%s0 + $0x110] sm:$0xff]
  %v96 = vld [vmem:[%s0 + $0x118] sm:$0xff]
  %v97 = vld [vmem:[%s0 + $0x120] sm:$0xff]
  %v98 = vld [vmem:[%s0 + $0x128] sm:$0xff]
  %v99 = vld [vmem:[%s0 + $0x130] sm:$0xff]
  %v100 = vld [vmem:[%s0 + $0x138] sm:$0xff]
  %v101 = vld [vmem:[%s0 + $0x140] sm:$0xff]
  %v102 = vld [vmem:[%s0 + $0x148] sm:$0xff]
  %v103 = vld [vmem:[%s0 + $0x150] sm:$0xff]
  %v104 = vld [vmem:[%s0 + $0x158] sm:$0xff]
  %v105 = vld [vmem:[%s0 + $0x160] sm:$0xff]
  %v106 = vld [vmem:[%s0 + $0x168] sm:$0xff]
  %v107 = vld [vmem:[%s0 + $0x170] sm:$0xff]
  %v108 = vld [vmem:[%s0 + $0x178] sm:$0xff]
  %v109 = vld [vmem:[%s0 + $0x180] sm:$0xff]
  %v110 = vld [vmem:[%s0 + $0x188] sm:$0xff]
  %v111 = vld [vmem:[%s0 + $0x190] sm:$0xff]
  %v112 = vld [vmem:[%s0 + $0x198] sm:$0xff]
  %v113 = vld [vmem:[%s0 + $0x1a0] sm:$0xff]
  %v114 = vld [vmem:[%s0 + $0x1a8] sm:$0xff]
  %v115 = vld [vmem:[%s0 + $0x1b0] sm:$0xff]
  %v116 = vld [vmem:[%s0 + $0x1b8] sm:$0xff]
  %v117 = vld [vmem:[%s0 + $0x1c0] sm:$0xff]
  %v118 = vld [vmem:[%s0 + $0x1c8] sm:$0xff]
  %v119 = vld [vmem:[%s0 + $0x1d0] sm:$0xff]
  %v120 = vld [vmem:[%s0 + $0x1d8] sm:$0xff]
  %v121 = vld [vmem:[%s0 + $0x1e0] sm:$0xff]
  %v122 = vld [vmem:[%s0 + $0x1e8] sm:$0xff]
  %v123 = vld [vmem:[%s0 + $0x1f0] sm:$0xff]
  %v124 = vld [vmem:[%s0 + $0x1f8] sm:$0xff]
  %125 = vmatprep.subr.mxu0 0.0
  %126 = vmatpush1.msra.mxu0 %v76
  %127 = vmatprep.subr.mxu0 0.0
  %128 = vmatpush1.msra.mxu0 %v75
  %129 = vmatprep.subr.mxu0 0.0
  %130 = vmatpush1.msra.mxu0 %v74
  %131 = vmatprep.subr.mxu0 0.0
  %132 = vmatpush1.msra.mxu0 %v73
  %133 = vmatprep.subr.mxu0 0.0
  %134 = vmatpush1.msra.mxu0 %v72
  %135 = vmatprep.subr.mxu0 0.0
  %136 = vmatpush1.msra.mxu0 %v71
  %137 = vmatprep.subr.mxu0 0.0
  %138 = vmatpush1.msra.mxu0 %v70
  %139 = vmatprep.subr.mxu0 0.0
  %140 = vmatpush1.msra.mxu0 %v69
  %141 = vmatprep.subr.mxu0 0.0
  %142 = vmatpush1.msra.mxu0 %v68
  %143 = vmatprep.subr.mxu0 0.0
  %144 = vmatpush1.msra.mxu0 %v67
  %145 = vmatprep.subr.mxu0 0.0
  %146 = vmatpush1.msra.mxu0 %v66
  %147 = vmatprep.subr.mxu0 0.0
  %148 = vmatpush1.msra.mxu0 %v65
  %149 = vmatprep.subr.mxu0 0.0
  %150 = vmatpush1.msra.mxu0 %v64
  %151 = vmatprep.subr.mxu0 0.0
  %152 = vmatpush1.msra.mxu0 %v63
  %153 = vmatprep.subr.mxu0 0.0
  %154 = vmatpush1.msra.mxu0 %v62
  %155 = vmatprep.subr.mxu0 0.0
  %156 = vmatpush1.msra.mxu0 %v61
  %157 = vmatprep.subr.mxu0 0.0
  %158 = vmatpush2.msra.mxu0 %v92
  %159 = vmatprep.subr.mxu0 0.0
  %160 = vmatpush2.msra.mxu0 %v91
  %161 = vmatprep.subr.mxu0 0.0
  %162 = vmatpush2.msra.mxu0 %v90
  %163 = vmatprep.subr.mxu0 0.0
  %164 = vmatpush2.msra.mxu0 %v89
  %165 = vmatprep.subr.mxu0 0.0
  %166 = vmatpush2.msra.mxu0 %v88
  %167 = vmatprep.subr.mxu0 0.0
  %168 = vmatpush2.msra.mxu0 %v87
  %169 = vmatprep.subr.mxu0 0.0
  %170 = vmatpush2.msra.mxu0 %v86
  %171 = vmatprep.subr.mxu0 0.0
  %172 = vmatpush2.msra.mxu0 %v85
  %173 = vmatprep.subr.mxu0 0.0
  %174 = vmatpush2.msra.mxu0 %v84
  %175 = vmatprep.subr.mxu0 0.0
  %176 = vmatpush2.msra.mxu0 %v83
  %177 = vmatprep.subr.mxu0 0.0
  %178 = vmatpush2.msra.mxu0 %v82
  %179 = vmatprep.subr.mxu0 0.0
  %180 = vmatpush2.msra.mxu0 %v81
  %181 = vmatprep.subr.mxu0 0.0
  %182 = vmatpush2.msra.mxu0 %v80
  %183 = vmatprep.subr.mxu0 0.0
  %184 = vmatpush2.msra.mxu0 %v79
  %185 = vmatprep.subr.mxu0 0.0
  %186 = vmatpush2.msra.mxu0 %v78
  %187 = vmatprep.subr.mxu0 0.0
  %188 = vmatpush2.msra.mxu0 %v77
  %189 = vmatprep.mubr.f32.mxu0 %v46
  %190 = vmatmul.mubr.f32.gmra.mxu0 %v45
  %v191 = vpop.f32.mrf.mxu0
  %v192 = vadd.f32 0.0, %v191
  %v193 = vpop.f32.mrf.mxu0
  %194 = vmatprep.mubr.f32.mxu0 %v50
  %195 = vmatmul.mubr.f32.gmra.mxu0 %v49
  %v196 = vpop.f32.mrf.mxu0
  %v197 = vadd.f32 0.0, %v196
  %v198 = vpop.f32.mrf.mxu0
  %199 = vmatprep.mubr.f32.mxu0 %v54
  %200 = vmatmul.mubr.f32.gmra.mxu0 %v53
  %v201 = vpop.f32.mrf.mxu0
  %v202 = vadd.f32 0.0, %v201
  %v203 = vpop.f32.mrf.mxu0
  %204 = vmatprep.mubr.f32.mxu0 %v58
  %205 = vmatmul.mubr.f32.gmra.mxu0 %v57
  %v206 = vpop.f32.mrf.mxu0
  %v207 = vadd.f32 0.0, %v206
  %v208 = vpop.f32.mrf.mxu0
  %209 = vdwg.mxu0
  %210 = vmatprep.subr.mxu0 0.0
  %211 = vmatpush1.msra.mxu0 %v108
  %212 = vmatprep.subr.mxu0 0.0
  %213 = vmatpush1.msra.mxu0 %v107
  %214 = vmatprep.subr.mxu0 0.0
  %215 = vmatpush1.msra.mxu0 %v106
  %216 = vmatprep.subr.mxu0 0.0
  %217 = vmatpush1.msra.mxu0 %v105
  %218 = vmatprep.subr.mxu0 0.0
  %219 = vmatpush1.msra.mxu0 %v104
  %220 = vmatprep.subr.mxu0 0.0
  %221 = vmatpush1.msra.mxu0 %v103
  %222 = vmatprep.subr.mxu0 0.0
  %223 = vmatpush1.msra.mxu0 %v102
  %224 = vmatprep.subr.mxu0 0.0
  %225 = vmatpush1.msra.mxu0 %v101
  %226 = vmatprep.subr.mxu0 0.0
  %227 = vmatpush1.msra.mxu0 %v100
  %228 = vmatprep.subr.mxu0 0.0
  %229 = vmatpush1.msra.mxu0 %v99
  %230 = vmatprep.subr.mxu0 0.0
  %231 = vmatpush1.msra.mxu0 %v98
  %232 = vmatprep.subr.mxu0 0.0
  %233 = vmatpush1.msra.mxu0 %v97
  %234 = vmatprep.subr.mxu0 0.0
  %235 = vmatpush1.msra.mxu0 %v96
  %236 = vmatprep.subr.mxu0 0.0
  %237 = vmatpush1.msra.mxu0 %v95
  %238 = vmatprep.subr.mxu0 0.0
  %239 = vmatpush1.msra.mxu0 %v94
  %240 = vmatprep.subr.mxu0 0.0
  %241 = vmatpush1.msra.mxu0 %v93
  %242 = vmatprep.subr.mxu0 0.0
  %243 = vmatpush2.msra.mxu0 %v124
  %244 = vmatprep.subr.mxu0 0.0
  %245 = vmatpush2.msra.mxu0 %v123
  %246 = vmatprep.subr.mxu0 0.0
  %247 = vmatpush2.msra.mxu0 %v122
  %248 = vmatprep.subr.mxu0 0.0
  %249 = vmatpush2.msra.mxu0 %v121
  %250 = vmatprep.subr.mxu0 0.0
  %251 = vmatpush2.msra.mxu0 %v120
  %252 = vmatprep.subr.mxu0 0.0
  %253 = vmatpush2.msra.mxu0 %v119
  %254 = vmatprep.subr.mxu0 0.0
  %255 = vmatpush2.msra.mxu0 %v118
  %256 = vmatprep.subr.mxu0 0.0
  %257 = vmatpush2.msra.mxu0 %v117
  %258 = vmatprep.subr.mxu0 0.0
  %259 = vmatpush2.msra.mxu0 %v116
  %260 = vmatprep.subr.mxu0 0.0
  %261 = vmatpush2.msra.mxu0 %v115
  %262 = vmatprep.subr.mxu0 0.0
  %263 = vmatpush2.msra.mxu0 %v114
  %264 = vmatprep.subr.mxu0 0.0
  %265 = vmatpush2.msra.mxu0 %v113
  %266 = vmatprep.subr.mxu0 0.0
  %267 = vmatpush2.msra.mxu0 %v112
  %268 = vmatprep.subr.mxu0 0.0
  %269 = vmatpush2.msra.mxu0 %v111
  %270 = vmatprep.subr.mxu0 0.0
  %271 = vmatpush2.msra.mxu0 %v110
  %272 = vmatprep.subr.mxu0 0.0
  %273 = vmatpush2.msra.mxu0 %v109
  %274 = vmatprep.mubr.f32.mxu0 %v48
  %275 = vmatmul.mubr.f32.gmra.mxu0 %v47
  %v276 = vpop.f32.mrf.mxu0
  %v277 = vadd.f32 %v192, %v276
  %v278 = vpop.f32.mrf.mxu0
  %279 = vmatprep.mubr.f32.mxu0 %v52
  %280 = vmatmul.mubr.f32.gmra.mxu0 %v51
  %v281 = vpop.f32.mrf.mxu0
  %v282 = vadd.f32 %v197, %v281
  %v283 = vpop.f32.mrf.mxu0
  %284 = vmatprep.mubr.f32.mxu0 %v56
  %285 = vmatmul.mubr.f32.gmra.mxu0 %v55
  %v286 = vpop.f32.mrf.mxu0
  %v287 = vadd.f32 %v202, %v286
  %v288 = vpop.f32.mrf.mxu0
  %289 = vmatprep.mubr.f32.mxu0 %v60
  %290 = vmatmul.mubr.f32.gmra.mxu0 %v59
  %v291 = vpop.f32.mrf.mxu0
  %v292 = vadd.f32 %v207, %v291
  %v293 = vpop.f32.mrf.mxu0
  %294 = vdwg.mxu0
  %vm295 = vcmask 261120
  %v296 = vsel %vm295, %v277, 0.0
  %297 = vadd.xlane.f32.xlu0 %v296
  %v298 = vpop.xlane.xlu0 %297
  %v299 = vsel %vm295, %v282, 0.0
  %300 = vadd.xlane.f32.xlu0 %v299
  %v301 = vpop.xlane.xlu0 %300
  %v302 = vsel %vm295, %v287, 0.0
  %303 = vadd.xlane.f32.xlu0 %v302
  %v304 = vpop.xlane.xlu0 %303
  %v305 = vsel %vm295, %v292, 0.0
  %306 = vadd.xlane.f32.xlu0 %v305
  %v307 = vpop.xlane.xlu0 %306
  %v308 = vmul.f32 %v277, %v277
  %v309 = vmul.f32 %v282, %v282
  %v310 = vmul.f32 %v287, %v287
  %v311 = vmul.f32 %v292, %v292
  %v312 = vsel %vm295, %v308, 0.0
  %313 = vadd.xlane.f32.xlu0 %v312
  %v314 = vpop.xlane.xlu0 %313
  %v315 = vsel %vm295, %v309, 0.0
  %316 = vadd.xlane.f32.xlu0 %v315
  %v317 = vpop.xlane.xlu0 %316
  %v318 = vsel %vm295, %v310, 0.0
  %319 = vadd.xlane.f32.xlu0 %v318
  %v320 = vpop.xlane.xlu0 %319
  %v321 = vsel %vm295, %v311, 0.0
  %322 = vadd.xlane.f32.xlu0 %v321
  %v323 = vpop.xlane.xlu0 %322
  %v324 = vmul.f32 %v298, 0.03125
  %v325 = vmul.f32 %v301, 0.03125
  %v326 = vmul.f32 %v304, 0.03125
  %v327 = vmul.f32 %v307, 0.03125
  %v328 = vmul.f32 %v314, 0.03125
  %v329 = vmul.f32 %v317, 0.03125
  %v330 = vmul.f32 %v320, 0.03125
  %v331 = vmul.f32 %v323, 0.03125
  %v332 = vmul.f32 %v324, %v324
  %v333 = vmul.f32 %v325, %v325
  %v334 = vmul.f32 %v326, %v326
  %v335 = vmul.f32 %v327, %v327
  %v336 = vsub.f32 %v328, %v332
  %v337 = vsub.f32 %v329, %v333
  %v338 = vsub.f32 %v330, %v334
  %v339 = vsub.f32 %v331, %v335
  %v340 = vld [vmem:[%s2] sm:$0xff]
  %v341 = vld [vmem:[%s2 + $0x8] sm:$0xff]
  %v342 = vld [vmem:[%s2 + $0x10] sm:$0xff]
  %v343 = vld [vmem:[%s2 + $0x18] sm:$0xff]
  %v344 = vadd.f32 %v336, 1e-05
  %v345 = vadd.f32 %v337, 1e-05
  %v346 = vadd.f32 %v338, 1e-05
  %v347 = vadd.f32 %v339, 1e-05
  %v348 = vrsqrt.pop %v344
  %v349 = vrsqrt.pop %v345
  %v350 = vrsqrt.pop %v346
  %v351 = vrsqrt.pop %v347
  %v352 = vmul.f32 %v340, %v348
  %v353 = vmul.f32 %v341, %v349
  %v354 = vmul.f32 %v342, %v350
  %v355 = vmul.f32 %v343, %v351
  %v356 = vmul.f32 %v324, %v352
  %v357 = vmul.f32 %v325, %v353
  %v358 = vmul.f32 %v326, %v354
  %v359 = vmul.f32 %v327, %v355
  %364 = vrot.lane.b32.xlu0 %v356, 1
  %v365 = vpop.permute.xlu0 %364
  %366 = vrot.lane.b32.xlu0 %v357, 1
  %v367 = vpop.permute.xlu0 %366
  %368 = vrot.lane.b32.xlu0 %v358, 1
  %v369 = vpop.permute.xlu0 %368
  %370 = vrot.lane.b32.xlu0 %v359, 1
  %v371 = vpop.permute.xlu0 %370
  %v376 = vsub.f32 %v340, %v365
  %v377 = vsub.f32 %v341, %v367
  %v378 = vsub.f32 %v342, %v369
  %v379 = vsub.f32 %v343, %v371
  %381 = vset.pattern.permute.xlu0 0
  %382 = vperm.xlu0 %381, %v352
  %v383 = vpop.permute.xlu0 %382
  %386 = vset.pattern.permute.xlu0 0
  %387 = vperm.xlu0 %386, %v353
  %v388 = vpop.permute.xlu0 %387
  %391 = vset.pattern.permute.xlu0 0
  %392 = vperm.xlu0 %391, %v354
  %v393 = vpop.permute.xlu0 %392
  %396 = vset.pattern.permute.xlu0 0
  %397 = vperm.xlu0 %396, %v355
  %v398 = vpop.permute.xlu0 %397
  %v400 = vmul.f32 %v277, %v383
  %v401 = vmul.f32 %v282, %v388
  %v402 = vmul.f32 %v287, %v393
  %v403 = vmul.f32 %v292, %v398
  %405 = vset.pattern.permute.xlu0 1
  %406 = vperm.xlu0 %405, %v376
  %v407 = vpop.permute.xlu0 %406
  %410 = vset.pattern.permute.xlu0 1
  %411 = vperm.xlu0 %410, %v377
  %v412 = vpop.permute.xlu0 %411
  %415 = vset.pattern.permute.xlu0 1
  %416 = vperm.xlu0 %415, %v378
  %v417 = vpop.permute.xlu0 %416
  %420 = vset.pattern.permute.xlu0 1
  %421 = vperm.xlu0 %420, %v379
  %v422 = vpop.permute.xlu0 %421
  %v424 = vadd.f32 %v400, %v407
  %v425 = vadd.f32 %v401, %v412
  %v426 = vadd.f32 %v402, %v417
  %v427 = vadd.f32 %v403, %v422
  %428 = vst.msk [vmem:[%s12] sm:$0xff] %vm295, %v424
  %429 = vst.msk [vmem:[%s12 + $0x8] sm:$0xff] %vm295, %v425
  %430 = vst.msk [vmem:[%s12 + $0x10] sm:$0xff] %vm295, %v426
  %431 = vst.msk [vmem:[%s12 + $0x18] sm:$0xff] %vm295, %v427
  %v432 = vld [vmem:[%s4] sm:$0xff]
  %v433 = vld [vmem:[%s4 + $0x8] sm:$0xff]
  %v434 = vld [vmem:[%s4 + $0x10] sm:$0xff]
  %v435 = vld [vmem:[%s4 + $0x18] sm:$0xff]
  %v436 = vld [vmem:[%s4 + $0x20] sm:$0xff]
  %v437 = vld [vmem:[%s4 + $0x28] sm:$0xff]
  %v438 = vld [vmem:[%s4 + $0x30] sm:$0xff]
  %v439 = vld [vmem:[%s4 + $0x38] sm:$0xff]
  %v440 = vld [vmem:[%s3] sm:$0xff]
  %v441 = vld [vmem:[%s3 + $0x8] sm:$0xff]
  %v442 = vld [vmem:[%s3 + $0x10] sm:$0xff]
  %v443 = vld [vmem:[%s3 + $0x18] sm:$0xff]
  %v444 = vld [vmem:[%s3 + $0x20] sm:$0xff]
  %v445 = vld [vmem:[%s3 + $0x28] sm:$0xff]
  %v446 = vld [vmem:[%s3 + $0x30] sm:$0xff]
  %v447 = vld [vmem:[%s3 + $0x38] sm:$0xff]
  %v448 = vld [vmem:[%s3 + $0x40] sm:$0xff]
  %v449 = vld [vmem:[%s3 + $0x48] sm:$0xff]
  %v450 = vld [vmem:[%s3 + $0x50] sm:$0xff]
  %v451 = vld [vmem:[%s3 + $0x58] sm:$0xff]
  %v452 = vld [vmem:[%s3 + $0x60] sm:$0xff]
  %v453 = vld [vmem:[%s3 + $0x68] sm:$0xff]
  %v454 = vld [vmem:[%s3 + $0x70] sm:$0xff]
  %v455 = vld [vmem:[%s3 + $0x78] sm:$0xff]
  %v456 = vld [vmem:[%s3 + $0x80] sm:$0xff]
  %v457 = vld [vmem:[%s3 + $0x88] sm:$0xff]
  %v458 = vld [vmem:[%s3 + $0x90] sm:$0xff]
  %v459 = vld [vmem:[%s3 + $0x98] sm:$0xff]
  %v460 = vld [vmem:[%s3 + $0xa0] sm:$0xff]
  %v461 = vld [vmem:[%s3 + $0xa8] sm:$0xff]
  %v462 = vld [vmem:[%s3 + $0xb0] sm:$0xff]
  %v463 = vld [vmem:[%s3 + $0xb8] sm:$0xff]
  %v464 = vld [vmem:[%s3 + $0xc0] sm:$0xff]
  %v465 = vld [vmem:[%s3 + $0xc8] sm:$0xff]
  %v466 = vld [vmem:[%s3 + $0xd0] sm:$0xff]
  %v467 = vld [vmem:[%s3 + $0xd8] sm:$0xff]
  %v468 = vld [vmem:[%s3 + $0xe0] sm:$0xff]
  %v469 = vld [vmem:[%s3 + $0xe8] sm:$0xff]
  %v470 = vld [vmem:[%s3 + $0xf0] sm:$0xff]
  %v471 = vld [vmem:[%s3 + $0xf8] sm:$0xff]
  %472 = vmatprep.subr.mxu0 0.0
  %473 = vmatpush1.msra.mxu0 %v455
  %474 = vmatprep.subr.mxu0 0.0
  %475 = vmatpush1.msra.mxu0 %v454
  %476 = vmatprep.subr.mxu0 0.0
  %477 = vmatpush1.msra.mxu0 %v453
  %478 = vmatprep.subr.mxu0 0.0
  %479 = vmatpush1.msra.mxu0 %v452
  %480 = vmatprep.subr.mxu0 0.0
  %481 = vmatpush1.msra.mxu0 %v451
  %482 = vmatprep.subr.mxu0 0.0
  %483 = vmatpush1.msra.mxu0 %v450
  %484 = vmatprep.subr.mxu0 0.0
  %485 = vmatpush1.msra.mxu0 %v449
  %486 = vmatprep.subr.mxu0 0.0
  %487 = vmatpush1.msra.mxu0 %v448
  %488 = vmatprep.subr.mxu0 0.0
  %489 = vmatpush1.msra.mxu0 %v447
  %490 = vmatprep.subr.mxu0 0.0
  %491 = vmatpush1.msra.mxu0 %v446
  %492 = vmatprep.subr.mxu0 0.0
  %493 = vmatpush1.msra.mxu0 %v445
  %494 = vmatprep.subr.mxu0 0.0
  %495 = vmatpush1.msra.mxu0 %v444
  %496 = vmatprep.subr.mxu0 0.0
  %497 = vmatpush1.msra.mxu0 %v443
  %498 = vmatprep.subr.mxu0 0.0
  %499 = vmatpush1.msra.mxu0 %v442
  %500 = vmatprep.subr.mxu0 0.0
  %501 = vmatpush1.msra.mxu0 %v441
  %502 = vmatprep.subr.mxu0 0.0
  %503 = vmatpush1.msra.mxu0 %v440
  %504 = vmatprep.subr.mxu0 0.0
  %505 = vmatpush2.msra.mxu0 %v471
  %506 = vmatprep.subr.mxu0 0.0
  %507 = vmatpush2.msra.mxu0 %v470
  %508 = vmatprep.subr.mxu0 0.0
  %509 = vmatpush2.msra.mxu0 %v469
  %510 = vmatprep.subr.mxu0 0.0
  %511 = vmatpush2.msra.mxu0 %v468
  %512 = vmatprep.subr.mxu0 0.0
  %513 = vmatpush2.msra.mxu0 %v467
  %514 = vmatprep.subr.mxu0 0.0
  %515 = vmatpush2.msra.mxu0 %v466
  %516 = vmatprep.subr.mxu0 0.0
  %517 = vmatpush2.msra.mxu0 %v465
  %518 = vmatprep.subr.mxu0 0.0
  %519 = vmatpush2.msra.mxu0 %v464
  %520 = vmatprep.subr.mxu0 0.0
  %521 = vmatpush2.msra.mxu0 %v463
  %522 = vmatprep.subr.mxu0 0.0
  %523 = vmatpush2.msra.mxu0 %v462
  %524 = vmatprep.subr.mxu0 0.0
  %525 = vmatpush2.msra.mxu0 %v461
  %526 = vmatprep.subr.mxu0 0.0
  %527 = vmatpush2.msra.mxu0 %v460
  %528 = vmatprep.subr.mxu0 0.0
  %529 = vmatpush2.msra.mxu0 %v459
  %530 = vmatprep.subr.mxu0 0.0
  %531 = vmatpush2.msra.mxu0 %v458
  %532 = vmatprep.subr.mxu0 0.0
  %533 = vmatpush2.msra.mxu0 %v457
  %534 = vmatprep.subr.mxu0 0.0
  %535 = vmatpush2.msra.mxu0 %v456
  %536 = vmatprep.mubr.f32.mxu0 %v433
  %537 = vmatmul.mubr.f32.gmra.mxu0 %v432
  %v538 = vpop.f32.mrf.mxu0
  %v539 = vadd.f32 0.0, %v538
  %v540 = vpop.f32.mrf.mxu0
  %541 = vmatprep.mubr.f32.mxu0 %v435
  %542 = vmatmul.mubr.f32.gmra.mxu0 %v434
  %v543 = vpop.f32.mrf.mxu0
  %v544 = vadd.f32 0.0, %v543
  %v545 = vpop.f32.mrf.mxu0
  %546 = vmatprep.mubr.f32.mxu0 %v437
  %547 = vmatmul.mubr.f32.gmra.mxu0 %v436
  %v548 = vpop.f32.mrf.mxu0
  %v549 = vadd.f32 0.0, %v548
  %v550 = vpop.f32.mrf.mxu0
  %551 = vmatprep.mubr.f32.mxu0 %v439
  %552 = vmatmul.mubr.f32.gmra.mxu0 %v438
  %v553 = vpop.f32.mrf.mxu0
  %v554 = vadd.f32 0.0, %v553
  %v555 = vpop.f32.mrf.mxu0
  %556 = vdwg.mxu0
  %557 = vadd.xlane.f32.xlu0 %v539
  %v558 = vpop.xlane.xlu0 %557
  %559 = vadd.xlane.f32.xlu0 %v544
  %v560 = vpop.xlane.xlu0 %559
  %561 = vadd.xlane.f32.xlu0 %v549
  %v562 = vpop.xlane.xlu0 %561
  %563 = vadd.xlane.f32.xlu0 %v554
  %v564 = vpop.xlane.xlu0 %563
  %v565 = vmul.f32 %v539, %v539
  %v566 = vmul.f32 %v544, %v544
  %v567 = vmul.f32 %v549, %v549
  %v568 = vmul.f32 %v554, %v554
  %569 = vadd.xlane.f32.xlu0 %v565
  %v570 = vpop.xlane.xlu0 %569
  %571 = vadd.xlane.f32.xlu0 %v566
  %v572 = vpop.xlane.xlu0 %571
  %573 = vadd.xlane.f32.xlu0 %v567
  %v574 = vpop.xlane.xlu0 %573
  %575 = vadd.xlane.f32.xlu0 %v568
  %v576 = vpop.xlane.xlu0 %575
  %v577 = vmul.f32 %v558, 0.0078125
  %v578 = vmul.f32 %v560, 0.0078125
  %v579 = vmul.f32 %v562, 0.0078125
  %v580 = vmul.f32 %v564, 0.0078125
  %v581 = vmul.f32 %v570, 0.0078125
  %v582 = vmul.f32 %v572, 0.0078125
  %v583 = vmul.f32 %v574, 0.0078125
  %v584 = vmul.f32 %v576, 0.0078125
  %v585 = vmul.f32 %v577, %v577
  %v586 = vmul.f32 %v578, %v578
  %v587 = vmul.f32 %v579, %v579
  %v588 = vmul.f32 %v580, %v580
  %v589 = vsub.f32 %v581, %v585
  %v590 = vsub.f32 %v582, %v586
  %v591 = vsub.f32 %v583, %v587
  %v592 = vsub.f32 %v584, %v588
  %v593 = vld [vmem:[%s5] sm:$0xff]
  %v594 = vld [vmem:[%s5 + $0x8] sm:$0xff]
  %v595 = vld [vmem:[%s5 + $0x10] sm:$0xff]
  %v596 = vld [vmem:[%s5 + $0x18] sm:$0xff]
  %v597 = vadd.f32 %v589, 1e-05
  %v598 = vadd.f32 %v590, 1e-05
  %v599 = vadd.f32 %v591, 1e-05
  %v600 = vadd.f32 %v592, 1e-05
  %v601 = vrsqrt.pop %v597
  %v602 = vrsqrt.pop %v598
  %v603 = vrsqrt.pop %v599
  %v604 = vrsqrt.pop %v600
  %v605 = vmul.f32 %v593, %v601
  %v606 = vmul.f32 %v594, %v602
  %v607 = vmul.f32 %v595, %v603
  %v608 = vmul.f32 %v596, %v604
  %v609 = vmul.f32 %v577, %v605
  %v610 = vmul.f32 %v578, %v606
  %v611 = vmul.f32 %v579, %v607
  %v612 = vmul.f32 %v580, %v608
  %617 = vrot.lane.b32.xlu0 %v609, 1
  %v618 = vpop.permute.xlu0 %617
  %619 = vrot.lane.b32.xlu0 %v610, 1
  %v620 = vpop.permute.xlu0 %619
  %621 = vrot.lane.b32.xlu0 %v611, 1
  %v622 = vpop.permute.xlu0 %621
  %623 = vrot.lane.b32.xlu0 %v612, 1
  %v624 = vpop.permute.xlu0 %623
  %v629 = vsub.f32 %v593, %v618
  %v630 = vsub.f32 %v594, %v620
  %v631 = vsub.f32 %v595, %v622
  %v632 = vsub.f32 %v596, %v624
  %634 = vset.pattern.permute.xlu0 0
  %635 = vperm.xlu0 %634, %v605
  %v636 = vpop.permute.xlu0 %635
  %639 = vset.pattern.permute.xlu0 0
  %640 = vperm.xlu0 %639, %v606
  %v641 = vpop.permute.xlu0 %640
  %644 = vset.pattern.permute.xlu0 0
  %645 = vperm.xlu0 %644, %v607
  %v646 = vpop.permute.xlu0 %645
  %649 = vset.pattern.permute.xlu0 0
  %650 = vperm.xlu0 %649, %v608
  %v651 = vpop.permute.xlu0 %650
  %v653 = vmul.f32 %v539, %v636
  %v654 = vmul.f32 %v544, %v641
  %v655 = vmul.f32 %v549, %v646
  %v656 = vmul.f32 %v554, %v651
  %658 = vset.pattern.permute.xlu0 1
  %659 = vperm.xlu0 %658, %v629
  %v660 = vpop.permute.xlu0 %659
  %663 = vset.pattern.permute.xlu0 1
  %664 = vperm.xlu0 %663, %v630
  %v665 = vpop.permute.xlu0 %664
  %668 = vset.pattern.permute.xlu0 1
  %669 = vperm.xlu0 %668, %v631
  %v670 = vpop.permute.xlu0 %669
  %673 = vset.pattern.permute.xlu0 1
  %674 = vperm.xlu0 %673, %v632
  %v675 = vpop.permute.xlu0 %674
  %v677 = vadd.f32 %v653, %v660
  %v678 = vadd.f32 %v654, %v665
  %v679 = vadd.f32 %v655, %v670
  %v680 = vadd.f32 %v656, %v675
  %681 = vst [vmem:[%s13] sm:$0xff] %v677
  %682 = vst [vmem:[%s13 + $0x8] sm:$0xff] %v678
  %683 = vst [vmem:[%s13 + $0x10] sm:$0xff] %v679
  %684 = vst [vmem:[%s13 + $0x18] sm:$0xff] %v680
  %v685 = vld [vmem:[%s7] sm:$0xff]
  %v686 = vld [vmem:[%s7 + $0x8] sm:$0xff]
  %v687 = vld [vmem:[%s6] sm:$0xff]
  %v688 = vld [vmem:[%s6 + $0x8] sm:$0xff]
  %v689 = vld [vmem:[%s6 + $0x10] sm:$0xff]
  %v690 = vld [vmem:[%s6 + $0x18] sm:$0xff]
  %v691 = vld [vmem:[%s6 + $0x20] sm:$0xff]
  %v692 = vld [vmem:[%s6 + $0x28] sm:$0xff]
  %v693 = vld [vmem:[%s6 + $0x30] sm:$0xff]
  %v694 = vld [vmem:[%s6 + $0x38] sm:$0xff]
  %v695 = vld [vmem:[%s6 + $0x40] sm:$0xff]
  %v696 = vld [vmem:[%s6 + $0x48] sm:$0xff]
  %v697 = vld [vmem:[%s6 + $0x50] sm:$0xff]
  %v698 = vld [vmem:[%s6 + $0x58] sm:$0xff]
  %v699 = vld [vmem:[%s6 + $0x60] sm:$0xff]
  %v700 = vld [vmem:[%s6 + $0x68] sm:$0xff]
  %v701 = vld [vmem:[%s6 + $0x70] sm:$0xff]
  %v702 = vld [vmem:[%s6 + $0x78] sm:$0xff]
  %v703 = vld [vmem:[%s6 + $0x80] sm:$0xff]
  %v704 = vld [vmem:[%s6 + $0x88] sm:$0xff]
  %v705 = vld [vmem:[%s6 + $0x90] sm:$0xff]
  %v706 = vld [vmem:[%s6 + $0x98] sm:$0xff]
  %v707 = vld [vmem:[%s6 + $0xa0] sm:$0xff]
  %v708 = vld [vmem:[%s6 + $0xa8] sm:$0xff]
  %v709 = vld [vmem:[%s6 + $0xb0] sm:$0xff]
  %v710 = vld [vmem:[%s6 + $0xb8] sm:$0xff]
  %v711 = vld [vmem:[%s6 + $0xc0] sm:$0xff]
  %v712 = vld [vmem:[%s6 + $0xc8] sm:$0xff]
  %v713 = vld [vmem:[%s6 + $0xd0] sm:$0xff]
  %v714 = vld [vmem:[%s6 + $0xd8] sm:$0xff]
  %v715 = vld [vmem:[%s6 + $0xe0] sm:$0xff]
  %v716 = vld [vmem:[%s6 + $0xe8] sm:$0xff]
  %v717 = vld [vmem:[%s6 + $0xf0] sm:$0xff]
  %v718 = vld [vmem:[%s6 + $0xf8] sm:$0xff]
  %v719 = vld [vmem:[%s6 + $0x100] sm:$0xff]
  %v720 = vld [vmem:[%s6 + $0x108] sm:$0xff]
  %v721 = vld [vmem:[%s6 + $0x110] sm:$0xff]
  %v722 = vld [vmem:[%s6 + $0x118] sm:$0xff]
  %v723 = vld [vmem:[%s6 + $0x120] sm:$0xff]
  %v724 = vld [vmem:[%s6 + $0x128] sm:$0xff]
  %v725 = vld [vmem:[%s6 + $0x130] sm:$0xff]
  %v726 = vld [vmem:[%s6 + $0x138] sm:$0xff]
  %v727 = vld [vmem:[%s6 + $0x140] sm:$0xff]
  %v728 = vld [vmem:[%s6 + $0x148] sm:$0xff]
  %v729 = vld [vmem:[%s6 + $0x150] sm:$0xff]
  %v730 = vld [vmem:[%s6 + $0x158] sm:$0xff]
  %v731 = vld [vmem:[%s6 + $0x160] sm:$0xff]
  %v732 = vld [vmem:[%s6 + $0x168] sm:$0xff]
  %v733 = vld [vmem:[%s6 + $0x170] sm:$0xff]
  %v734 = vld [vmem:[%s6 + $0x178] sm:$0xff]
  %v735 = vld [vmem:[%s6 + $0x180] sm:$0xff]
  %v736 = vld [vmem:[%s6 + $0x188] sm:$0xff]
  %v737 = vld [vmem:[%s6 + $0x190] sm:$0xff]
  %v738 = vld [vmem:[%s6 + $0x198] sm:$0xff]
  %v739 = vld [vmem:[%s6 + $0x1a0] sm:$0xff]
  %v740 = vld [vmem:[%s6 + $0x1a8] sm:$0xff]
  %v741 = vld [vmem:[%s6 + $0x1b0] sm:$0xff]
  %v742 = vld [vmem:[%s6 + $0x1b8] sm:$0xff]
  %v743 = vld [vmem:[%s6 + $0x1c0] sm:$0xff]
  %v744 = vld [vmem:[%s6 + $0x1c8] sm:$0xff]
  %v745 = vld [vmem:[%s6 + $0x1d0] sm:$0xff]
  %v746 = vld [vmem:[%s6 + $0x1d8] sm:$0xff]
  %v747 = vld [vmem:[%s6 + $0x1e0] sm:$0xff]
  %v748 = vld [vmem:[%s6 + $0x1e8] sm:$0xff]
  %v749 = vld [vmem:[%s6 + $0x1f0] sm:$0xff]
  %v750 = vld [vmem:[%s6 + $0x1f8] sm:$0xff]
  %751 = vmatprep.subr.mxu0 %v748
  %752 = vmatpush1.msra.mxu0 %v747
  %753 = vmatprep.subr.mxu0 %v744
  %754 = vmatpush1.msra.mxu0 %v743
  %755 = vmatprep.subr.mxu0 %v740
  %756 = vmatpush1.msra.mxu0 %v739
  %757 = vmatprep.subr.mxu0 %v736
  %758 = vmatpush1.msra.mxu0 %v735
  %759 = vmatprep.subr.mxu0 %v732
  %760 = vmatpush1.msra.mxu0 %v731
  %761 = vmatprep.subr.mxu0 %v728
  %762 = vmatpush1.msra.mxu0 %v727
  %763 = vmatprep.subr.mxu0 %v724
  %764 = vmatpush1.msra.mxu0 %v723
  %765 = vmatprep.subr.mxu0 %v720
  %766 = vmatpush1.msra.mxu0 %v719
  %767 = vmatprep.subr.mxu0 %v716
  %768 = vmatpush1.msra.mxu0 %v715
  %769 = vmatprep.subr.mxu0 %v712
  %770 = vmatpush1.msra.mxu0 %v711
  %771 = vmatprep.subr.mxu0 %v708
  %772 = vmatpush1.msra.mxu0 %v707
  %773 = vmatprep.subr.mxu0 %v704
  %774 = vmatpush1.msra.mxu0 %v703
  %775 = vmatprep.subr.mxu0 %v700
  %776 = vmatpush1.msra.mxu0 %v699
  %777 = vmatprep.subr.mxu0 %v696
  %778 = vmatpush1.msra.mxu0 %v695
  %779 = vmatprep.subr.mxu0 %v692
  %780 = vmatpush1.msra.mxu0 %v691
  %781 = vmatprep.subr.mxu0 %v688
  %782 = vmatpush1.msra.mxu0 %v687
  %783 = vmatprep.subr.mxu0 0.0
  %784 = vmatpush2.msra.mxu0 0.0
  %785 = vmatprep.subr.mxu0 0.0
  %786 = vmatpush2.msra.mxu0 0.0
  %787 = vmatprep.subr.mxu0 0.0
  %788 = vmatpush2.msra.mxu0 0.0
  %789 = vmatprep.subr.mxu0 0.0
  %790 = vmatpush2.msra.mxu0 0.0
  %791 = vmatprep.subr.mxu0 0.0
  %792 = vmatpush2.msra.mxu0 0.0
  %793 = vmatprep.subr.mxu0 0.0
  %794 = vmatpush2.msra.mxu0 0.0
  %795 = vmatprep.subr.mxu0 0.0
  %796 = vmatpush2.msra.mxu0 0.0
  %797 = vmatprep.subr.mxu0 0.0
  %798 = vmatpush2.msra.mxu0 0.0
  %799 = vmatprep.subr.mxu0 0.0
  %800 = vmatpush2.msra.mxu0 0.0
  %801 = vmatprep.subr.mxu0 0.0
  %802 = vmatpush2.msra.mxu0 0.0
  %803 = vmatprep.subr.mxu0 0.0
  %804 = vmatpush2.msra.mxu0 0.0
  %805 = vmatprep.subr.mxu0 0.0
  %806 = vmatpush2.msra.mxu0 0.0
  %807 = vmatprep.subr.mxu0 0.0
  %808 = vmatpush2.msra.mxu0 0.0
  %809 = vmatprep.subr.mxu0 0.0
  %810 = vmatpush2.msra.mxu0 0.0
  %811 = vmatprep.subr.mxu0 0.0
  %812 = vmatpush2.msra.mxu0 0.0
  %813 = vmatprep.subr.mxu0 0.0
  %814 = vmatpush2.msra.mxu0 0.0
  %815 = vmatprep.mubr.f32.mxu0 0.0
  %816 = vmatmul.mubr.f32.gmra.mxu0 %v685
  %v817 = vpop.f32.mrf.mxu0
  %v818 = vadd.f32 0.0, %v817
  %v819 = vpop.f32.mrf.mxu0
  %v820 = vadd.f32 0.0, %v819
  %821 = vmatprep.mubr.f32.mxu0 0.0
  %822 = vmatmul.mubr.f32.gmra.mxu0 %v686
  %v823 = vpop.f32.mrf.mxu0
  %v824 = vadd.f32 0.0, %v823
  %v825 = vpop.f32.mrf.mxu0
  %v826 = vadd.f32 0.0, %v825
  %827 = vdwg.mxu0
  %828 = vmatprep.subr.mxu0 %v750
  %829 = vmatpush1.msra.mxu0 %v749
  %830 = vmatprep.subr.mxu0 %v746
  %831 = vmatpush1.msra.mxu0 %v745
  %832 = vmatprep.subr.mxu0 %v742
  %833 = vmatpush1.msra.mxu0 %v741
  %834 = vmatprep.subr.mxu0 %v738
  %835 = vmatpush1.msra.mxu0 %v737
  %836 = vmatprep.subr.mxu0 %v734
  %837 = vmatpush1.msra.mxu0 %v733
  %838 = vmatprep.subr.mxu0 %v730
  %839 = vmatpush1.msra.mxu0 %v729
  %840 = vmatprep.subr.mxu0 %v726
  %841 = vmatpush1.msra.mxu0 %v725
  %842 = vmatprep.subr.mxu0 %v722
  %843 = vmatpush1.msra.mxu0 %v721
  %844 = vmatprep.subr.mxu0 %v718
  %845 = vmatpush1.msra.mxu0 %v717
  %846 = vmatprep.subr.mxu0 %v714
  %847 = vmatpush1.msra.mxu0 %v713
  %848 = vmatprep.subr.mxu0 %v710
  %849 = vmatpush1.msra.mxu0 %v709
  %850 = vmatprep.subr.mxu0 %v706
  %851 = vmatpush1.msra.mxu0 %v705
  %852 = vmatprep.subr.mxu0 %v702
  %853 = vmatpush1.msra.mxu0 %v701
  %854 = vmatprep.subr.mxu0 %v698
  %855 = vmatpush1.msra.mxu0 %v697
  %856 = vmatprep.subr.mxu0 %v694
  %857 = vmatpush1.msra.mxu0 %v693
  %858 = vmatprep.subr.mxu0 %v690
  %859 = vmatpush1.msra.mxu0 %v689
  %860 = vmatprep.subr.mxu0 0.0
  %861 = vmatpush2.msra.mxu0 0.0
  %862 = vmatprep.subr.mxu0 0.0
  %863 = vmatpush2.msra.mxu0 0.0
  %864 = vmatprep.subr.mxu0 0.0
  %865 = vmatpush2.msra.mxu0 0.0
  %866 = vmatprep.subr.mxu0 0.0
  %867 = vmatpush2.msra.mxu0 0.0
  %868 = vmatprep.subr.mxu0 0.0
  %869 = vmatpush2.msra.mxu0 0.0
  %870 = vmatprep.subr.mxu0 0.0
  %871 = vmatpush2.msra.mxu0 0.0
  %872 = vmatprep.subr.mxu0 0.0
  %873 = vmatpush2.msra.mxu0 0.0
  %874 = vmatprep.subr.mxu0 0.0
  %875 = vmatpush2.msra.mxu0 0.0
  %876 = vmatprep.subr.mxu0 0.0
  %877 = vmatpush2.msra.mxu0 0.0
  %878 = vmatprep.subr.mxu0 0.0
  %879 = vmatpush2.msra.mxu0 0.0
  %880 = vmatprep.subr.mxu0 0.0
  %881 = vmatpush2.msra.mxu0 0.0
  %882 = vmatprep.subr.mxu0 0.0
  %883 = vmatpush2.msra.mxu0 0.0
  %884 = vmatprep.subr.mxu0 0.0
  %885 = vmatpush2.msra.mxu0 0.0
  %886 = vmatprep.subr.mxu0 0.0
  %887 = vmatpush2.msra.mxu0 0.0
  %888 = vmatprep.subr.mxu0 0.0
  %889 = vmatpush2.msra.mxu0 0.0
  %890 = vmatprep.subr.mxu0 0.0
  %891 = vmatpush2.msra.mxu0 0.0
  %892 = vmatprep.mubr.f32.mxu0 0.0
  %893 = vmatmul.mubr.f32.gmra.mxu0 %v685
  %v894 = vpop.f32.mrf.mxu0
  %v895 = vadd.f32 0.0, %v894
  %v896 = vpop.f32.mrf.mxu0
  %v897 = vadd.f32 0.0, %v896
  %898 = vmatprep.mubr.f32.mxu0 0.0
  %899 = vmatmul.mubr.f32.gmra.mxu0 %v686
  %v900 = vpop.f32.mrf.mxu0
  %v901 = vadd.f32 0.0, %v900
  %v902 = vpop.f32.mrf.mxu0
  %v903 = vadd.f32 0.0, %v902
  %904 = vdwg.mxu0
  %v905 = vadd.f32 %v818, %v820
  %v906 = vadd.f32 %v905, %v895
  %v907 = vadd.f32 %v906, %v897
  %908 = vadd.xlane.f32.xlu0 %v907
  %v909 = vpop.xlane.xlu0 %908
  %v910 = vadd.f32 %v824, %v826
  %v911 = vadd.f32 %v910, %v901
  %v912 = vadd.f32 %v911, %v903
  %913 = vadd.xlane.f32.xlu0 %v912
  %v914 = vpop.xlane.xlu0 %913
  %v915 = vmul.f32 %v818, %v818
  %v916 = vmul.f32 %v820, %v820
  %v917 = vmul.f32 %v895, %v895
  %v918 = vmul.f32 %v897, %v897
  %v919 = vmul.f32 %v824, %v824
  %v920 = vmul.f32 %v826, %v826
  %v921 = vmul.f32 %v901, %v901
  %v922 = vmul.f32 %v903, %v903
  %v923 = vadd.f32 %v915, %v916
  %v924 = vadd.f32 %v923, %v917
  %v925 = vadd.f32 %v924, %v918
  %926 = vadd.xlane.f32.xlu0 %v925
  %v927 = vpop.xlane.xlu0 %926
  %v928 = vadd.f32 %v919, %v920
  %v929 = vadd.f32 %v928, %v921
  %v930 = vadd.f32 %v929, %v922
  %931 = vadd.xlane.f32.xlu0 %v930
  %v932 = vpop.xlane.xlu0 %931
  %v933 = vmul.f32 %v909, 0.001953125
  %v934 = vmul.f32 %v914, 0.001953125
  %v935 = vmul.f32 %v927, 0.001953125
  %v936 = vmul.f32 %v932, 0.001953125
  %v937 = vmul.f32 %v933, %v933
  %v938 = vmul.f32 %v934, %v934
  %v939 = vsub.f32 %v935, %v937
  %v940 = vsub.f32 %v936, %v938
  %v941 = vld [vmem:[%s8] sm:$0xff]
  %v942 = vld [vmem:[%s8 + $0x8] sm:$0xff]
  %v943 = vadd.f32 %v939, 1e-05
  %v944 = vadd.f32 %v940, 1e-05
  %v945 = vrsqrt.pop %v943
  %v946 = vrsqrt.pop %v944
  %v947 = vmul.f32 %v941, %v945
  %v948 = vmul.f32 %v942, %v946
  %v949 = vmul.f32 %v933, %v947
  %v950 = vmul.f32 %v934, %v948
  %953 = vrot.lane.b32.xlu0 %v949, 1
  %v954 = vpop.permute.xlu0 %953
  %955 = vrot.lane.b32.xlu0 %v950, 1
  %v956 = vpop.permute.xlu0 %955
  %v959 = vsub.f32 %v941, %v954
  %v960 = vsub.f32 %v942, %v956
  %962 = vset.pattern.permute.xlu0 0
  %963 = vperm.xlu0 %962, %v947
  %v964 = vpop.permute.xlu0 %963
  %967 = vset.pattern.permute.xlu0 0
  %968 = vperm.xlu0 %967, %v948
  %v969 = vpop.permute.xlu0 %968
  %v971 = vmul.f32 %v818, %v964
  %v972 = vmul.f32 %v820, %v964
  %v973 = vmul.f32 %v895, %v964
  %v974 = vmul.f32 %v897, %v964
  %v975 = vmul.f32 %v824, %v969
  %v976 = vmul.f32 %v826, %v969
  %v977 = vmul.f32 %v901, %v969
  %v978 = vmul.f32 %v903, %v969
  %980 = vset.pattern.permute.xlu0 1
  %981 = vperm.xlu0 %980, %v959
  %v982 = vpop.permute.xlu0 %981
  %985 = vset.pattern.permute.xlu0 1
  %986 = vperm.xlu0 %985, %v960
  %v987 = vpop.permute.xlu0 %986
  %v989 = vadd.f32 %v971, %v982
  %v990 = vadd.f32 %v972, %v982
  %v991 = vadd.f32 %v973, %v982
  %v992 = vadd.f32 %v974, %v982
  %v993 = vadd.f32 %v975, %v987
  %v994 = vadd.f32 %v976, %v987
  %v995 = vadd.f32 %v977, %v987
  %v996 = vadd.f32 %v978, %v987
  %997 = vst [vmem:[%s14] sm:$0xff] %v989
  %998 = vst [vmem:[%s14 + $0x8] sm:$0xff] %v990
  %999 = vst [vmem:[%s14 + $0x10] sm:$0xff] %v991
  %1000 = vst [vmem:[%s14 + $0x18] sm:$0xff] %v992
  %1001 = vst [vmem:[%s14 + $0x20] sm:$0xff] %v993
  %1002 = vst [vmem:[%s14 + $0x28] sm:$0xff] %v994
  %1003 = vst [vmem:[%s14 + $0x30] sm:$0xff] %v995
  %1004 = vst [vmem:[%s14 + $0x38] sm:$0xff] %v996
  %v1005 = vld [vmem:[%s10] sm:$0xff]
  %v1006 = vld [vmem:[%s9] sm:$0xff]
  %v1007 = vld [vmem:[%s9 + $0x8] sm:$0xff]
  %v1008 = vld [vmem:[%s9 + $0x10] sm:$0xff]
  %v1009 = vld [vmem:[%s9 + $0x18] sm:$0xff]
  %v1010 = vld [vmem:[%s9 + $0x20] sm:$0xff]
  %v1011 = vld [vmem:[%s9 + $0x28] sm:$0xff]
  %v1012 = vld [vmem:[%s9 + $0x30] sm:$0xff]
  %v1013 = vld [vmem:[%s9 + $0x38] sm:$0xff]
  %v1014 = vld [vmem:[%s9 + $0x40] sm:$0xff]
  %v1015 = vld [vmem:[%s9 + $0x48] sm:$0xff]
  %v1016 = vld [vmem:[%s9 + $0x50] sm:$0xff]
  %v1017 = vld [vmem:[%s9 + $0x58] sm:$0xff]
  %v1018 = vld [vmem:[%s9 + $0x60] sm:$0xff]
  %v1019 = vld [vmem:[%s9 + $0x68] sm:$0xff]
  %v1020 = vld [vmem:[%s9 + $0x70] sm:$0xff]
  %v1021 = vld [vmem:[%s9 + $0x78] sm:$0xff]
  %v1022 = vld [vmem:[%s9 + $0x80] sm:$0xff]
  %v1023 = vld [vmem:[%s9 + $0x88] sm:$0xff]
  %v1024 = vld [vmem:[%s9 + $0x90] sm:$0xff]
  %v1025 = vld [vmem:[%s9 + $0x98] sm:$0xff]
  %v1026 = vld [vmem:[%s9 + $0xa0] sm:$0xff]
  %v1027 = vld [vmem:[%s9 + $0xa8] sm:$0xff]
  %v1028 = vld [vmem:[%s9 + $0xb0] sm:$0xff]
  %v1029 = vld [vmem:[%s9 + $0xb8] sm:$0xff]
  %v1030 = vld [vmem:[%s9 + $0xc0] sm:$0xff]
  %v1031 = vld [vmem:[%s9 + $0xc8] sm:$0xff]
  %v1032 = vld [vmem:[%s9 + $0xd0] sm:$0xff]
  %v1033 = vld [vmem:[%s9 + $0xd8] sm:$0xff]
  %v1034 = vld [vmem:[%s9 + $0xe0] sm:$0xff]
  %v1035 = vld [vmem:[%s9 + $0xe8] sm:$0xff]
  %v1036 = vld [vmem:[%s9 + $0xf0] sm:$0xff]
  %v1037 = vld [vmem:[%s9 + $0xf8] sm:$0xff]
  %v1038 = vld [vmem:[%s9 + $0x100] sm:$0xff]
  %v1039 = vld [vmem:[%s9 + $0x108] sm:$0xff]
  %v1040 = vld [vmem:[%s9 + $0x110] sm:$0xff]
  %v1041 = vld [vmem:[%s9 + $0x118] sm:$0xff]
  %v1042 = vld [vmem:[%s9 + $0x120] sm:$0xff]
  %v1043 = vld [vmem:[%s9 + $0x128] sm:$0xff]
  %v1044 = vld [vmem:[%s9 + $0x130] sm:$0xff]
  %v1045 = vld [vmem:[%s9 + $0x138] sm:$0xff]
  %v1046 = vld [vmem:[%s9 + $0x140] sm:$0xff]
  %v1047 = vld [vmem:[%s9 + $0x148] sm:$0xff]
  %v1048 = vld [vmem:[%s9 + $0x150] sm:$0xff]
  %v1049 = vld [vmem:[%s9 + $0x158] sm:$0xff]
  %v1050 = vld [vmem:[%s9 + $0x160] sm:$0xff]
  %v1051 = vld [vmem:[%s9 + $0x168] sm:$0xff]
  %v1052 = vld [vmem:[%s9 + $0x170] sm:$0xff]
  %v1053 = vld [vmem:[%s9 + $0x178] sm:$0xff]
  %v1054 = vld [vmem:[%s9 + $0x180] sm:$0xff]
  %v1055 = vld [vmem:[%s9 + $0x188] sm:$0xff]
  %v1056 = vld [vmem:[%s9 + $0x190] sm:$0xff]
  %v1057 = vld [vmem:[%s9 + $0x198] sm:$0xff]
  %v1058 = vld [vmem:[%s9 + $0x1a0] sm:$0xff]
  %v1059 = vld [vmem:[%s9 + $0x1a8] sm:$0xff]
  %v1060 = vld [vmem:[%s9 + $0x1b0] sm:$0xff]
  %v1061 = vld [vmem:[%s9 + $0x1b8] sm:$0xff]
  %v1062 = vld [vmem:[%s9 + $0x1c0] sm:$0xff]
  %v1063 = vld [vmem:[%s9 + $0x1c8] sm:$0xff]
  %v1064 = vld [vmem:[%s9 + $0x1d0] sm:$0xff]
  %v1065 = vld [vmem:[%s9 + $0x1d8] sm:$0xff]
  %v1066 = vld [vmem:[%s9 + $0x1e0] sm:$0xff]
  %v1067 = vld [vmem:[%s9 + $0x1e8] sm:$0xff]
  %v1068 = vld [vmem:[%s9 + $0x1f0] sm:$0xff]
  %v1069 = vld [vmem:[%s9 + $0x1f8] sm:$0xff]
  %v1070 = vld [vmem:[%s9 + $0x200] sm:$0xff]
  %v1071 = vld [vmem:[%s9 + $0x208] sm:$0xff]
  %v1072 = vld [vmem:[%s9 + $0x210] sm:$0xff]
  %v1073 = vld [vmem:[%s9 + $0x218] sm:$0xff]
  %v1074 = vld [vmem:[%s9 + $0x220] sm:$0xff]
  %v1075 = vld [vmem:[%s9 + $0x228] sm:$0xff]
  %v1076 = vld [vmem:[%s9 + $0x230] sm:$0xff]
  %v1077 = vld [vmem:[%s9 + $0x238] sm:$0xff]
  %v1078 = vld [vmem:[%s9 + $0x240] sm:$0xff]
  %v1079 = vld [vmem:[%s9 + $0x248] sm:$0xff]
  %v1080 = vld [vmem:[%s9 + $0x250] sm:$0xff]
  %v1081 = vld [vmem:[%s9 + $0x258] sm:$0xff]
  %v1082 = vld [vmem:[%s9 + $0x260] sm:$0xff]
  %v1083 = vld [vmem:[%s9 + $0x268] sm:$0xff]
  %v1084 = vld [vmem:[%s9 + $0x270] sm:$0xff]
  %v1085 = vld [vmem:[%s9 + $0x278] sm:$0xff]
  %v1086 = vld [vmem:[%s9 + $0x280] sm:$0xff]
  %v1087 = vld [vmem:[%s9 + $0x288] sm:$0xff]
  %v1088 = vld [vmem:[%s9 + $0x290] sm:$0xff]
  %v1089 = vld [vmem:[%s9 + $0x298] sm:$0xff]
  %v1090 = vld [vmem:[%s9 + $0x2a0] sm:$0xff]
  %v1091 = vld [vmem:[%s9 + $0x2a8] sm:$0xff]
  %v1092 = vld [vmem:[%s9 + $0x2b0] sm:$0xff]
  %v1093 = vld [vmem:[%s9 + $0x2b8] sm:$0xff]
  %v1094 = vld [vmem:[%s9 + $0x2c0] sm:$0xff]
  %v1095 = vld [vmem:[%s9 + $0x2c8] sm:$0xff]
  %v1096 = vld [vmem:[%s9 + $0x2d0] sm:$0xff]
  %v1097 = vld [vmem:[%s9 + $0x2d8] sm:$0xff]
  %v1098 = vld [vmem:[%s9 + $0x2e0] sm:$0xff]
  %v1099 = vld [vmem:[%s9 + $0x2e8] sm:$0xff]
  %v1100 = vld [vmem:[%s9 + $0x2f0] sm:$0xff]
  %v1101 = vld [vmem:[%s9 + $0x2f8] sm:$0xff]
  %v1102 = vld [vmem:[%s9 + $0x300] sm:$0xff]
  %v1103 = vld [vmem:[%s9 + $0x308] sm:$0xff]
  %v1104 = vld [vmem:[%s9 + $0x310] sm:$0xff]
  %v1105 = vld [vmem:[%s9 + $0x318] sm:$0xff]
  %v1106 = vld [vmem:[%s9 + $0x320] sm:$0xff]
  %v1107 = vld [vmem:[%s9 + $0x328] sm:$0xff]
  %v1108 = vld [vmem:[%s9 + $0x330] sm:$0xff]
  %v1109 = vld [vmem:[%s9 + $0x338] sm:$0xff]
  %v1110 = vld [vmem:[%s9 + $0x340] sm:$0xff]
  %v1111 = vld [vmem:[%s9 + $0x348] sm:$0xff]
  %v1112 = vld [vmem:[%s9 + $0x350] sm:$0xff]
  %v1113 = vld [vmem:[%s9 + $0x358] sm:$0xff]
  %v1114 = vld [vmem:[%s9 + $0x360] sm:$0xff]
  %v1115 = vld [vmem:[%s9 + $0x368] sm:$0xff]
  %v1116 = vld [vmem:[%s9 + $0x370] sm:$0xff]
  %v1117 = vld [vmem:[%s9 + $0x378] sm:$0xff]
  %v1118 = vld [vmem:[%s9 + $0x380] sm:$0xff]
  %v1119 = vld [vmem:[%s9 + $0x388] sm:$0xff]
  %v1120 = vld [vmem:[%s9 + $0x390] sm:$0xff]
  %v1121 = vld [vmem:[%s9 + $0x398] sm:$0xff]
  %v1122 = vld [vmem:[%s9 + $0x3a0] sm:$0xff]
  %v1123 = vld [vmem:[%s9 + $0x3a8] sm:$0xff]
  %v1124 = vld [vmem:[%s9 + $0x3b0] sm:$0xff]
  %v1125 = vld [vmem:[%s9 + $0x3b8] sm:$0xff]
  %v1126 = vld [vmem:[%s9 + $0x3c0] sm:$0xff]
  %v1127 = vld [vmem:[%s9 + $0x3c8] sm:$0xff]
  %v1128 = vld [vmem:[%s9 + $0x3d0] sm:$0xff]
  %v1129 = vld [vmem:[%s9 + $0x3d8] sm:$0xff]
  %v1130 = vld [vmem:[%s9 + $0x3e0] sm:$0xff]
  %v1131 = vld [vmem:[%s9 + $0x3e8] sm:$0xff]
  %v1132 = vld [vmem:[%s9 + $0x3f0] sm:$0xff]
  %v1133 = vld [vmem:[%s9 + $0x3f8] sm:$0xff]
  %vm1134 = vcmask 523264
  %v1136 = vsel %vm1134, %v1005, 0
  %1138 = vmatprep.subr.mxu0 0.0
  %1139 = vmatpush1.msra.mxu0 0.0
  %1140 = vmatprep.subr.mxu0 0.0
  %1141 = vmatpush1.msra.mxu0 0.0
  %1142 = vmatprep.subr.mxu0 0.0
  %1143 = vmatpush1.msra.mxu0 0.0
  %1144 = vmatprep.subr.mxu0 0.0
  %1145 = vmatpush1.msra.mxu0 0.0
  %1146 = vmatprep.subr.mxu0 0.0
  %1147 = vmatpush1.msra.mxu0 0.0
  %1148 = vmatprep.subr.mxu0 0.0
  %1149 = vmatpush1.msra.mxu0 0.0
  %1150 = vmatprep.subr.mxu0 0.0
  %1151 = vmatpush1.msra.mxu0 0.0
  %1152 = vmatprep.subr.mxu0 0.0
  %1153 = vmatpush1.msra.mxu0 0.0
  %1154 = vmatprep.subr.mxu0 %v1119
  %1155 = vmatpush1.msra.mxu0 %v1118
  %1156 = vmatprep.subr.mxu0 %v1103
  %1157 = vmatpush1.msra.mxu0 %v1102
  %1158 = vmatprep.subr.mxu0 %v1087
  %1159 = vmatpush1.msra.mxu0 %v1086
  %1160 = vmatprep.subr.mxu0 %v1071
  %1161 = vmatpush1.msra.mxu0 %v1070
  %1162 = vmatprep.subr.mxu0 %v1055
  %1163 = vmatpush1.msra.mxu0 %v1054
  %1164 = vmatprep.subr.mxu0 %v1039
  %1165 = vmatpush1.msra.mxu0 %v1038
  %1166 = vmatprep.subr.mxu0 %v1023
  %1167 = vmatpush1.msra.mxu0 %v1022
  %1168 = vmatprep.subr.mxu0 %v1007
  %1169 = vmatpush1.msra.mxu0 %v1006
  %1170 = vmatprep.subr.mxu0 0.0
  %1171 = vmatpush2.msra.mxu0 0.0
  %1172 = vmatprep.subr.mxu0 0.0
  %1173 = vmatpush2.msra.mxu0 0.0
  %1174 = vmatprep.subr.mxu0 0.0
  %1175 = vmatpush2.msra.mxu0 0.0
  %1176 = vmatprep.subr.mxu0 0.0
  %1177 = vmatpush2.msra.mxu0 0.0
  %1178 = vmatprep.subr.mxu0 0.0
  %1179 = vmatpush2.msra.mxu0 0.0
  %1180 = vmatprep.subr.mxu0 0.0
  %1181 = vmatpush2.msra.mxu0 0.0
  %1182 = vmatprep.subr.mxu0 0.0
  %1183 = vmatpush2.msra.mxu0 0.0
  %1184 = vmatprep.subr.mxu0 0.0
  %1185 = vmatpush2.msra.mxu0 0.0
  %1186 = vmatprep.subr.mxu0 0.0
  %1187 = vmatpush2.msra.mxu0 0.0
  %1188 = vmatprep.subr.mxu0 0.0
  %1189 = vmatpush2.msra.mxu0 0.0
  %1190 = vmatprep.subr.mxu0 0.0
  %1191 = vmatpush2.msra.mxu0 0.0
  %1192 = vmatprep.subr.mxu0 0.0
  %1193 = vmatpush2.msra.mxu0 0.0
  %1194 = vmatprep.subr.mxu0 0.0
  %1195 = vmatpush2.msra.mxu0 0.0
  %1196 = vmatprep.subr.mxu0 0.0
  %1197 = vmatpush2.msra.mxu0 0.0
  %1198 = vmatprep.subr.mxu0 0.0
  %1199 = vmatpush2.msra.mxu0 0.0
  %1200 = vmatprep.subr.mxu0 0.0
  %1201 = vmatpush2.msra.mxu0 0.0
  %1202 = vmatprep.mubr.f32.mxu0 0.0
  %1203 = vmatmul.mubr.f32.gmra.mxu0 %v1136
  %v1204 = vpop.f32.mrf.mxu0
  %v1205 = vadd.f32 0.0, %v1204
  %v1206 = vpop.f32.mrf.mxu0
  %v1207 = vadd.f32 0.0, %v1206
  %1208 = vdwg.mxu0
  %1209 = vmatprep.subr.mxu0 0.0
  %1210 = vmatpush1.msra.mxu0 0.0
  %1211 = vmatprep.subr.mxu0 0.0
  %1212 = vmatpush1.msra.mxu0 0.0
  %1213 = vmatprep.subr.mxu0 0.0
  %1214 = vmatpush1.msra.mxu0 0.0
  %1215 = vmatprep.subr.mxu0 0.0
  %1216 = vmatpush1.msra.mxu0 0.0
  %1217 = vmatprep.subr.mxu0 0.0
  %1218 = vmatpush1.msra.mxu0 0.0
  %1219 = vmatprep.subr.mxu0 0.0
  %1220 = vmatpush1.msra.mxu0 0.0
  %1221 = vmatprep.subr.mxu0 0.0
  %1222 = vmatpush1.msra.mxu0 0.0
  %1223 = vmatprep.subr.mxu0 0.0
  %1224 = vmatpush1.msra.mxu0 0.0
  %1225 = vmatprep.subr.mxu0 %v1121
  %1226 = vmatpush1.msra.mxu0 %v1120
  %1227 = vmatprep.subr.mxu0 %v1105
  %1228 = vmatpush1.msra.mxu0 %v1104
  %1229 = vmatprep.subr.mxu0 %v1089
  %1230 = vmatpush1.msra.mxu0 %v1088
  %1231 = vmatprep.subr.mxu0 %v1073
  %1232 = vmatpush1.msra.mxu0 %v1072
  %1233 = vmatprep.subr.mxu0 %v1057
  %1234 = vmatpush1.msra.mxu0 %v1056
  %1235 = vmatprep.subr.mxu0 %v1041
  %1236 = vmatpush1.msra.mxu0 %v1040
  %1237 = vmatprep.subr.mxu0 %v1025
  %1238 = vmatpush1.msra.mxu0 %v1024
  %1239 = vmatprep.subr.mxu0 %v1009
  %1240 = vmatpush1.msra.mxu0 %v1008
  %1241 = vmatprep.subr.mxu0 0.0
  %1242 = vmatpush2.msra.mxu0 0.0
  %1243 = vmatprep.subr.mxu0 0.0
  %1244 = vmatpush2.msra.mxu0 0.0
  %1245 = vmatprep.subr.mxu0 0.0
  %1246 = vmatpush2.msra.mxu0 0.0
  %1247 = vmatprep.subr.mxu0 0.0
  %1248 = vmatpush2.msra.mxu0 0.0
  %1249 = vmatprep.subr.mxu0 0.0
  %1250 = vmatpush2.msra.mxu0 0.0
  %1251 = vmatprep.subr.mxu0 0.0
  %1252 = vmatpush2.msra.mxu0 0.0
  %1253 = vmatprep.subr.mxu0 0.0
  %1254 = vmatpush2.msra.mxu0 0.0
  %1255 = vmatprep.subr.mxu0 0.0
  %1256 = vmatpush2.msra.mxu0 0.0
  %1257 = vmatprep.subr.mxu0 0.0
  %1258 = vmatpush2.msra.mxu0 0.0
  %1259 = vmatprep.subr.mxu0 0.0
  %1260 = vmatpush2.msra.mxu0 0.0
  %1261 = vmatprep.subr.mxu0 0.0
  %1262 = vmatpush2.msra.mxu0 0.0
  %1263 = vmatprep.subr.mxu0 0.0
  %1264 = vmatpush2.msra.mxu0 0.0
  %1265 = vmatprep.subr.mxu0 0.0
  %1266 = vmatpush2.msra.mxu0 0.0
  %1267 = vmatprep.subr.mxu0 0.0
  %1268 = vmatpush2.msra.mxu0 0.0
  %1269 = vmatprep.subr.mxu0 0.0
  %1270 = vmatpush2.msra.mxu0 0.0
  %1271 = vmatprep.subr.mxu0 0.0
  %1272 = vmatpush2.msra.mxu0 0.0
  %1273 = vmatprep.mubr.f32.mxu0 0.0
  %1274 = vmatmul.mubr.f32.gmra.mxu0 %v1136
  %v1275 = vpop.f32.mrf.mxu0
  %v1276 = vadd.f32 0.0, %v1275
  %v1277 = vpop.f32.mrf.mxu0
  %v1278 = vadd.f32 0.0, %v1277
  %1279 = vdwg.mxu0
  %1280 = vmatprep.subr.mxu0 0.0
  %1281 = vmatpush1.msra.mxu0 0.0
  %1282 = vmatprep.subr.mxu0 0.0
  %1283 = vmatpush1.msra.mxu0 0.0
  %1284 = vmatprep.subr.mxu0 0.0
  %1285 = vmatpush1.msra.mxu0 0.0
  %1286 = vmatprep.subr.mxu0 0.0
  %1287 = vmatpush1.msra.mxu0 0.0
  %1288 = vmatprep.subr.mxu0 0.0
  %1289 = vmatpush1.msra.mxu0 0.0
  %1290 = vmatprep.subr.mxu0 0.0
  %1291 = vmatpush1.msra.mxu0 0.0
  %1292 = vmatprep.subr.mxu0 0.0
  %1293 = vmatpush1.msra.mxu0 0.0
  %1294 = vmatprep.subr.mxu0 0.0
  %1295 = vmatpush1.msra.mxu0 0.0
  %1296 = vmatprep.subr.mxu0 %v1123
  %1297 = vmatpush1.msra.mxu0 %v1122
  %1298 = vmatprep.subr.mxu0 %v1107
  %1299 = vmatpush1.msra.mxu0 %v1106
  %1300 = vmatprep.subr.mxu0 %v1091
  %1301 = vmatpush1.msra.mxu0 %v1090
  %1302 = vmatprep.subr.mxu0 %v1075
  %1303 = vmatpush1.msra.mxu0 %v1074
  %1304 = vmatprep.subr.mxu0 %v1059
  %1305 = vmatpush1.msra.mxu0 %v1058
  %1306 = vmatprep.subr.mxu0 %v1043
  %1307 = vmatpush1.msra.mxu0 %v1042
  %1308 = vmatprep.subr.mxu0 %v1027
  %1309 = vmatpush1.msra.mxu0 %v1026
  %1310 = vmatprep.subr.mxu0 %v1011
  %1311 = vmatpush1.msra.mxu0 %v1010
  %1312 = vmatprep.subr.mxu0 0.0
  %1313 = vmatpush2.msra.mxu0 0.0
  %1314 = vmatprep.subr.mxu0 0.0
  %1315 = vmatpush2.msra.mxu0 0.0
  %1316 = vmatprep.subr.mxu0 0.0
  %1317 = vmatpush2.msra.mxu0 0.0
  %1318 = vmatprep.subr.mxu0 0.0
  %1319 = vmatpush2.msra.mxu0 0.0
  %1320 = vmatprep.subr.mxu0 0.0
  %1321 = vmatpush2.msra.mxu0 0.0
  %1322 = vmatprep.subr.mxu0 0.0
  %1323 = vmatpush2.msra.mxu0 0.0
  %1324 = vmatprep.subr.mxu0 0.0
  %1325 = vmatpush2.msra.mxu0 0.0
  %1326 = vmatprep.subr.mxu0 0.0
  %1327 = vmatpush2.msra.mxu0 0.0
  %1328 = vmatprep.subr.mxu0 0.0
  %1329 = vmatpush2.msra.mxu0 0.0
  %1330 = vmatprep.subr.mxu0 0.0
  %1331 = vmatpush2.msra.mxu0 0.0
  %1332 = vmatprep.subr.mxu0 0.0
  %1333 = vmatpush2.msra.mxu0 0.0
  %1334 = vmatprep.subr.mxu0 0.0
  %1335 = vmatpush2.msra.mxu0 0.0
  %1336 = vmatprep.subr.mxu0 0.0
  %1337 = vmatpush2.msra.mxu0 0.0
  %1338 = vmatprep.subr.mxu0 0.0
  %1339 = vmatpush2.msra.mxu0 0.0
  %1340 = vmatprep.subr.mxu0 0.0
  %1341 = vmatpush2.msra.mxu0 0.0
  %1342 = vmatprep.subr.mxu0 0.0
  %1343 = vmatpush2.msra.mxu0 0.0
  %1344 = vmatprep.mubr.f32.mxu0 0.0
  %1345 = vmatmul.mubr.f32.gmra.mxu0 %v1136
  %v1346 = vpop.f32.mrf.mxu0
  %v1347 = vadd.f32 0.0, %v1346
  %v1348 = vpop.f32.mrf.mxu0
  %v1349 = vadd.f32 0.0, %v1348
  %1350 = vdwg.mxu0
  %1351 = vmatprep.subr.mxu0 0.0
  %1352 = vmatpush1.msra.mxu0 0.0
  %1353 = vmatprep.subr.mxu0 0.0
  %1354 = vmatpush1.msra.mxu0 0.0
  %1355 = vmatprep.subr.mxu0 0.0
  %1356 = vmatpush1.msra.mxu0 0.0
  %1357 = vmatprep.subr.mxu0 0.0
  %1358 = vmatpush1.msra.mxu0 0.0
  %1359 = vmatprep.subr.mxu0 0.0
  %1360 = vmatpush1.msra.mxu0 0.0
  %1361 = vmatprep.subr.mxu0 0.0
  %1362 = vmatpush1.msra.mxu0 0.0
  %1363 = vmatprep.subr.mxu0 0.0
  %1364 = vmatpush1.msra.mxu0 0.0
  %1365 = vmatprep.subr.mxu0 0.0
  %1366 = vmatpush1.msra.mxu0 0.0
  %1367 = vmatprep.subr.mxu0 %v1125
  %1368 = vmatpush1.msra.mxu0 %v1124
  %1369 = vmatprep.subr.mxu0 %v1109
  %1370 = vmatpush1.msra.mxu0 %v1108
  %1371 = vmatprep.subr.mxu0 %v1093
  %1372 = vmatpush1.msra.mxu0 %v1092
  %1373 = vmatprep.subr.mxu0 %v1077
  %1374 = vmatpush1.msra.mxu0 %v1076
  %1375 = vmatprep.subr.mxu0 %v1061
  %1376 = vmatpush1.msra.mxu0 %v1060
  %1377 = vmatprep.subr.mxu0 %v1045
  %1378 = vmatpush1.msra.mxu0 %v1044
  %1379 = vmatprep.subr.mxu0 %v1029
  %1380 = vmatpush1.msra.mxu0 %v1028
  %1381 = vmatprep.subr.mxu0 %v1013
  %1382 = vmatpush1.msra.mxu0 %v1012
  %1383 = vmatprep.subr.mxu0 0.0
  %1384 = vmatpush2.msra.mxu0 0.0
  %1385 = vmatprep.subr.mxu0 0.0
  %1386 = vmatpush2.msra.mxu0 0.0
  %1387 = vmatprep.subr.mxu0 0.0
  %1388 = vmatpush2.msra.mxu0 0.0
  %1389 = vmatprep.subr.mxu0 0.0
  %1390 = vmatpush2.msra.mxu0 0.0
  %1391 = vmatprep.subr.mxu0 0.0
  %1392 = vmatpush2.msra.mxu0 0.0
  %1393 = vmatprep.subr.mxu0 0.0
  %1394 = vmatpush2.msra.mxu0 0.0
  %1395 = vmatprep.subr.mxu0 0.0
  %1396 = vmatpush2.msra.mxu0 0.0
  %1397 = vmatprep.subr.mxu0 0.0
  %1398 = vmatpush2.msra.mxu0 0.0
  %1399 = vmatprep.subr.mxu0 0.0
  %1400 = vmatpush2.msra.mxu0 0.0
  %1401 = vmatprep.subr.mxu0 0.0
  %1402 = vmatpush2.msra.mxu0 0.0
  %1403 = vmatprep.subr.mxu0 0.0
  %1404 = vmatpush2.msra.mxu0 0.0
  %1405 = vmatprep.subr.mxu0 0.0
  %1406 = vmatpush2.msra.mxu0 0.0
  %1407 = vmatprep.subr.mxu0 0.0
  %1408 = vmatpush2.msra.mxu0 0.0
  %1409 = vmatprep.subr.mxu0 0.0
  %1410 = vmatpush2.msra.mxu0 0.0
  %1411 = vmatprep.subr.mxu0 0.0
  %1412 = vmatpush2.msra.mxu0 0.0
  %1413 = vmatprep.subr.mxu0 0.0
  %1414 = vmatpush2.msra.mxu0 0.0
  %1415 = vmatprep.mubr.f32.mxu0 0.0
  %1416 = vmatmul.mubr.f32.gmra.mxu0 %v1136
  %v1417 = vpop.f32.mrf.mxu0
  %v1418 = vadd.f32 0.0, %v1417
  %v1419 = vpop.f32.mrf.mxu0
  %v1420 = vadd.f32 0.0, %v1419
  %1421 = vdwg.mxu0
  %1422 = vmatprep.subr.mxu0 0.0
  %1423 = vmatpush1.msra.mxu0 0.0
  %1424 = vmatprep.subr.mxu0 0.0
  %1425 = vmatpush1.msra.mxu0 0.0
  %1426 = vmatprep.subr.mxu0 0.0
  %1427 = vmatpush1.msra.mxu0 0.0
  %1428 = vmatprep.subr.mxu0 0.0
  %1429 = vmatpush1.msra.mxu0 0.0
  %1430 = vmatprep.subr.mxu0 0.0
  %1431 = vmatpush1.msra.mxu0 0.0
  %1432 = vmatprep.subr.mxu0 0.0
  %1433 = vmatpush1.msra.mxu0 0.0
  %1434 = vmatprep.subr.mxu0 0.0
  %1435 = vmatpush1.msra.mxu0 0.0
  %1436 = vmatprep.subr.mxu0 0.0
  %1437 = vmatpush1.msra.mxu0 0.0
  %1438 = vmatprep.subr.mxu0 %v1127
  %1439 = vmatpush1.msra.mxu0 %v1126
  %1440 = vmatprep.subr.mxu0 %v1111
  %1441 = vmatpush1.msra.mxu0 %v1110
  %1442 = vmatprep.subr.mxu0 %v1095
  %1443 = vmatpush1.msra.mxu0 %v1094
  %1444 = vmatprep.subr.mxu0 %v1079
  %1445 = vmatpush1.msra.mxu0 %v1078
  %1446 = vmatprep.subr.mxu0 %v1063
  %1447 = vmatpush1.msra.mxu0 %v1062
  %1448 = vmatprep.subr.mxu0 %v1047
  %1449 = vmatpush1.msra.mxu0 %v1046
  %1450 = vmatprep.subr.mxu0 %v1031
  %1451 = vmatpush1.msra.mxu0 %v1030
  %1452 = vmatprep.subr.mxu0 %v1015
  %1453 = vmatpush1.msra.mxu0 %v1014
  %1454 = vmatprep.subr.mxu0 0.0
  %1455 = vmatpush2.msra.mxu0 0.0
  %1456 = vmatprep.subr.mxu0 0.0
  %1457 = vmatpush2.msra.mxu0 0.0
  %1458 = vmatprep.subr.mxu0 0.0
  %1459 = vmatpush2.msra.mxu0 0.0
  %1460 = vmatprep.subr.mxu0 0.0
  %1461 = vmatpush2.msra.mxu0 0.0
  %1462 = vmatprep.subr.mxu0 0.0
  %1463 = vmatpush2.msra.mxu0 0.0
  %1464 = vmatprep.subr.mxu0 0.0
  %1465 = vmatpush2.msra.mxu0 0.0
  %1466 = vmatprep.subr.mxu0 0.0
  %1467 = vmatpush2.msra.mxu0 0.0
  %1468 = vmatprep.subr.mxu0 0.0
  %1469 = vmatpush2.msra.mxu0 0.0
  %1470 = vmatprep.subr.mxu0 0.0
  %1471 = vmatpush2.msra.mxu0 0.0
  %1472 = vmatprep.subr.mxu0 0.0
  %1473 = vmatpush2.msra.mxu0 0.0
  %1474 = vmatprep.subr.mxu0 0.0
  %1475 = vmatpush2.msra.mxu0 0.0
  %1476 = vmatprep.subr.mxu0 0.0
  %1477 = vmatpush2.msra.mxu0 0.0
  %1478 = vmatprep.subr.mxu0 0.0
  %1479 = vmatpush2.msra.mxu0 0.0
  %1480 = vmatprep.subr.mxu0 0.0
  %1481 = vmatpush2.msra.mxu0 0.0
  %1482 = vmatprep.subr.mxu0 0.0
  %1483 = vmatpush2.msra.mxu0 0.0
  %1484 = vmatprep.subr.mxu0 0.0
  %1485 = vmatpush2.msra.mxu0 0.0
  %1486 = vmatprep.mubr.f32.mxu0 0.0
  %1487 = vmatmul.mubr.f32.gmra.mxu0 %v1136
  %v1488 = vpop.f32.mrf.mxu0
  %v1489 = vadd.f32 0.0, %v1488
  %v1490 = vpop.f32.mrf.mxu0
  %v1491 = vadd.f32 0.0, %v1490
  %1492 = vdwg.mxu0
  %1493 = vmatprep.subr.mxu0 0.0
  %1494 = vmatpush1.msra.mxu0 0.0
  %1495 = vmatprep.subr.mxu0 0.0
  %1496 = vmatpush1.msra.mxu0 0.0
  %1497 = vmatprep.subr.mxu0 0.0
  %1498 = vmatpush1.msra.mxu0 0.0
  %1499 = vmatprep.subr.mxu0 0.0
  %1500 = vmatpush1.msra.mxu0 0.0
  %1501 = vmatprep.subr.mxu0 0.0
  %1502 = vmatpush1.msra.mxu0 0.0
  %1503 = vmatprep.subr.mxu0 0.0
  %1504 = vmatpush1.msra.mxu0 0.0
  %1505 = vmatprep.subr.mxu0 0.0
  %1506 = vmatpush1.msra.mxu0 0.0
  %1507 = vmatprep.subr.mxu0 0.0
  %1508 = vmatpush1.msra.mxu0 0.0
  %1509 = vmatprep.subr.mxu0 %v1129
  %1510 = vmatpush1.msra.mxu0 %v1128
  %1511 = vmatprep.subr.mxu0 %v1113
  %1512 = vmatpush1.msra.mxu0 %v1112
  %1513 = vmatprep.subr.mxu0 %v1097
  %1514 = vmatpush1.msra.mxu0 %v1096
  %1515 = vmatprep.subr.mxu0 %v1081
  %1516 = vmatpush1.msra.mxu0 %v1080
  %1517 = vmatprep.subr.mxu0 %v1065
  %1518 = vmatpush1.msra.mxu0 %v1064
  %1519 = vmatprep.subr.mxu0 %v1049
  %1520 = vmatpush1.msra.mxu0 %v1048
  %1521 = vmatprep.subr.mxu0 %v1033
  %1522 = vmatpush1.msra.mxu0 %v1032
  %1523 = vmatprep.subr.mxu0 %v1017
  %1524 = vmatpush1.msra.mxu0 %v1016
  %1525 = vmatprep.subr.mxu0 0.0
  %1526 = vmatpush2.msra.mxu0 0.0
  %1527 = vmatprep.subr.mxu0 0.0
  %1528 = vmatpush2.msra.mxu0 0.0
  %1529 = vmatprep.subr.mxu0 0.0
  %1530 = vmatpush2.msra.mxu0 0.0
  %1531 = vmatprep.subr.mxu0 0.0
  %1532 = vmatpush2.msra.mxu0 0.0
  %1533 = vmatprep.subr.mxu0 0.0
  %1534 = vmatpush2.msra.mxu0 0.0
  %1535 = vmatprep.subr.mxu0 0.0
  %1536 = vmatpush2.msra.mxu0 0.0
  %1537 = vmatprep.subr.mxu0 0.0
  %1538 = vmatpush2.msra.mxu0 0.0
  %1539 = vmatprep.subr.mxu0 0.0
  %1540 = vmatpush2.msra.mxu0 0.0
  %1541 = vmatprep.subr.mxu0 0.0
  %1542 = vmatpush2.msra.mxu0 0.0
  %1543 = vmatprep.subr.mxu0 0.0
  %1544 = vmatpush2.msra.mxu0 0.0
  %1545 = vmatprep.subr.mxu0 0.0
  %1546 = vmatpush2.msra.mxu0 0.0
  %1547 = vmatprep.subr.mxu0 0.0
  %1548 = vmatpush2.msra.mxu0 0.0
  %1549 = vmatprep.subr.mxu0 0.0
  %1550 = vmatpush2.msra.mxu0 0.0
  %1551 = vmatprep.subr.mxu0 0.0
  %1552 = vmatpush2.msra.mxu0 0.0
  %1553 = vmatprep.subr.mxu0 0.0
  %1554 = vmatpush2.msra.mxu0 0.0
  %1555 = vmatprep.subr.mxu0 0.0
  %1556 = vmatpush2.msra.mxu0 0.0
  %1557 = vmatprep.mubr.f32.mxu0 0.0
  %1558 = vmatmul.mubr.f32.gmra.mxu0 %v1136
  %v1559 = vpop.f32.mrf.mxu0
  %v1560 = vadd.f32 0.0, %v1559
  %v1561 = vpop.f32.mrf.mxu0
  %v1562 = vadd.f32 0.0, %v1561
  %1563 = vdwg.mxu0
  %1564 = vmatprep.subr.mxu0 0.0
  %1565 = vmatpush1.msra.mxu0 0.0
  %1566 = vmatprep.subr.mxu0 0.0
  %1567 = vmatpush1.msra.mxu0 0.0
  %1568 = vmatprep.subr.mxu0 0.0
  %1569 = vmatpush1.msra.mxu0 0.0
  %1570 = vmatprep.subr.mxu0 0.0
  %1571 = vmatpush1.msra.mxu0 0.0
  %1572 = vmatprep.subr.mxu0 0.0
  %1573 = vmatpush1.msra.mxu0 0.0
  %1574 = vmatprep.subr.mxu0 0.0
  %1575 = vmatpush1.msra.mxu0 0.0
  %1576 = vmatprep.subr.mxu0 0.0
  %1577 = vmatpush1.msra.mxu0 0.0
  %1578 = vmatprep.subr.mxu0 0.0
  %1579 = vmatpush1.msra.mxu0 0.0
  %1580 = vmatprep.subr.mxu0 %v1131
  %1581 = vmatpush1.msra.mxu0 %v1130
  %1582 = vmatprep.subr.mxu0 %v1115
  %1583 = vmatpush1.msra.mxu0 %v1114
  %1584 = vmatprep.subr.mxu0 %v1099
  %1585 = vmatpush1.msra.mxu0 %v1098
  %1586 = vmatprep.subr.mxu0 %v1083
  %1587 = vmatpush1.msra.mxu0 %v1082
  %1588 = vmatprep.subr.mxu0 %v1067
  %1589 = vmatpush1.msra.mxu0 %v1066
  %1590 = vmatprep.subr.mxu0 %v1051
  %1591 = vmatpush1.msra.mxu0 %v1050
  %1592 = vmatprep.subr.mxu0 %v1035
  %1593 = vmatpush1.msra.mxu0 %v1034
  %1594 = vmatprep.subr.mxu0 %v1019
  %1595 = vmatpush1.msra.mxu0 %v1018
  %1596 = vmatprep.subr.mxu0 0.0
  %1597 = vmatpush2.msra.mxu0 0.0
  %1598 = vmatprep.subr.mxu0 0.0
  %1599 = vmatpush2.msra.mxu0 0.0
  %1600 = vmatprep.subr.mxu0 0.0
  %1601 = vmatpush2.msra.mxu0 0.0
  %1602 = vmatprep.subr.mxu0 0.0
  %1603 = vmatpush2.msra.mxu0 0.0
  %1604 = vmatprep.subr.mxu0 0.0
  %1605 = vmatpush2.msra.mxu0 0.0
  %1606 = vmatprep.subr.mxu0 0.0
  %1607 = vmatpush2.msra.mxu0 0.0
  %1608 = vmatprep.subr.mxu0 0.0
  %1609 = vmatpush2.msra.mxu0 0.0
  %1610 = vmatprep.subr.mxu0 0.0
  %1611 = vmatpush2.msra.mxu0 0.0
  %1612 = vmatprep.subr.mxu0 0.0
  %1613 = vmatpush2.msra.mxu0 0.0
  %1614 = vmatprep.subr.mxu0 0.0
  %1615 = vmatpush2.msra.mxu0 0.0
  %1616 = vmatprep.subr.mxu0 0.0
  %1617 = vmatpush2.msra.mxu0 0.0
  %1618 = vmatprep.subr.mxu0 0.0
  %1619 = vmatpush2.msra.mxu0 0.0
  %1620 = vmatprep.subr.mxu0 0.0
  %1621 = vmatpush2.msra.mxu0 0.0
  %1622 = vmatprep.subr.mxu0 0.0
  %1623 = vmatpush2.msra.mxu0 0.0
  %1624 = vmatprep.subr.mxu0 0.0
  %1625 = vmatpush2.msra.mxu0 0.0
  %1626 = vmatprep.subr.mxu0 0.0
  %1627 = vmatpush2.msra.mxu0 0.0
  %1628 = vmatprep.mubr.f32.mxu0 0.0
  %1629 = vmatmul.mubr.f32.gmra.mxu0 %v1136
  %v1630 = vpop.f32.mrf.mxu0
  %v1631 = vadd.f32 0.0, %v1630
  %v1632 = vpop.f32.mrf.mxu0
  %v1633 = vadd.f32 0.0, %v1632
  %1634 = vdwg.mxu0
  %1635 = vmatprep.subr.mxu0 0.0
  %1636 = vmatpush1.msra.mxu0 0.0
  %1637 = vmatprep.subr.mxu0 0.0
  %1638 = vmatpush1.msra.mxu0 0.0
  %1639 = vmatprep.subr.mxu0 0.0
  %1640 = vmatpush1.msra.mxu0 0.0
  %1641 = vmatprep.subr.mxu0 0.0
  %1642 = vmatpush1.msra.mxu0 0.0
  %1643 = vmatprep.subr.mxu0 0.0
  %1644 = vmatpush1.msra.mxu0 0.0
  %1645 = vmatprep.subr.mxu0 0.0
  %1646 = vmatpush1.msra.mxu0 0.0
  %1647 = vmatprep.subr.mxu0 0.0
  %1648 = vmatpush1.msra.mxu0 0.0
  %1649 = vmatprep.subr.mxu0 0.0
  %1650 = vmatpush1.msra.mxu0 0.0
  %1651 = vmatprep.subr.mxu0 %v1133
  %1652 = vmatpush1.msra.mxu0 %v1132
  %1653 = vmatprep.subr.mxu0 %v1117
  %1654 = vmatpush1.msra.mxu0 %v1116
  %1655 = vmatprep.subr.mxu0 %v1101
  %1656 = vmatpush1.msra.mxu0 %v1100
  %1657 = vmatprep.subr.mxu0 %v1085
  %1658 = vmatpush1.msra.mxu0 %v1084
  %1659 = vmatprep.subr.mxu0 %v1069
  %1660 = vmatpush1.msra.mxu0 %v1068
  %1661 = vmatprep.subr.mxu0 %v1053
  %1662 = vmatpush1.msra.mxu0 %v1052
  %1663 = vmatprep.subr.mxu0 %v1037
  %1664 = vmatpush1.msra.mxu0 %v1036
  %1665 = vmatprep.subr.mxu0 %v1021
  %1666 = vmatpush1.msra.mxu0 %v1020
  %1667 = vmatprep.subr.mxu0 0.0
  %1668 = vmatpush2.msra.mxu0 0.0
  %1669 = vmatprep.subr.mxu0 0.0
  %1670 = vmatpush2.msra.mxu0 0.0
  %1671 = vmatprep.subr.mxu0 0.0
  %1672 = vmatpush2.msra.mxu0 0.0
  %1673 = vmatprep.subr.mxu0 0.0
  %1674 = vmatpush2.msra.mxu0 0.0
  %1675 = vmatprep.subr.mxu0 0.0
  %1676 = vmatpush2.msra.mxu0 0.0
  %1677 = vmatprep.subr.mxu0 0.0
  %1678 = vmatpush2.msra.mxu0 0.0
  %1679 = vmatprep.subr.mxu0 0.0
  %1680 = vmatpush2.msra.mxu0 0.0
  %1681 = vmatprep.subr.mxu0 0.0
  %1682 = vmatpush2.msra.mxu0 0.0
  %1683 = vmatprep.subr.mxu0 0.0
  %1684 = vmatpush2.msra.mxu0 0.0
  %1685 = vmatprep.subr.mxu0 0.0
  %1686 = vmatpush2.msra.mxu0 0.0
  %1687 = vmatprep.subr.mxu0 0.0
  %1688 = vmatpush2.msra.mxu0 0.0
  %1689 = vmatprep.subr.mxu0 0.0
  %1690 = vmatpush2.msra.mxu0 0.0
  %1691 = vmatprep.subr.mxu0 0.0
  %1692 = vmatpush2.msra.mxu0 0.0
  %1693 = vmatprep.subr.mxu0 0.0
  %1694 = vmatpush2.msra.mxu0 0.0
  %1695 = vmatprep.subr.mxu0 0.0
  %1696 = vmatpush2.msra.mxu0 0.0
  %1697 = vmatprep.subr.mxu0 0.0
  %1698 = vmatpush2.msra.mxu0 0.0
  %1699 = vmatprep.mubr.f32.mxu0 0.0
  %1700 = vmatmul.mubr.f32.gmra.mxu0 %v1136
  %v1701 = vpop.f32.mrf.mxu0
  %v1702 = vadd.f32 0.0, %v1701
  %v1703 = vpop.f32.mrf.mxu0
  %v1704 = vadd.f32 0.0, %v1703
  %1705 = vdwg.mxu0
  %v1706 = vadd.f32 %v1205, %v1207
  %v1707 = vadd.f32 %v1706, %v1276
  %v1708 = vadd.f32 %v1707, %v1278
  %v1709 = vadd.f32 %v1708, %v1347
  %v1710 = vadd.f32 %v1709, %v1349
  %v1711 = vadd.f32 %v1710, %v1418
  %v1712 = vadd.f32 %v1711, %v1420
  %v1713 = vadd.f32 %v1712, %v1489
  %v1714 = vadd.f32 %v1713, %v1491
  %v1715 = vadd.f32 %v1714, %v1560
  %v1716 = vadd.f32 %v1715, %v1562
  %v1717 = vadd.f32 %v1716, %v1631
  %v1718 = vadd.f32 %v1717, %v1633
  %v1719 = vadd.f32 %v1718, %v1702
  %v1720 = vadd.f32 %v1719, %v1704
  %1721 = vadd.xlane.f32.xlu0 %v1720
  %v1722 = vpop.xlane.xlu0 %1721
  %v1723 = vmul.f32 %v1205, %v1205
  %v1724 = vmul.f32 %v1207, %v1207
  %v1725 = vmul.f32 %v1276, %v1276
  %v1726 = vmul.f32 %v1278, %v1278
  %v1727 = vmul.f32 %v1347, %v1347
  %v1728 = vmul.f32 %v1349, %v1349
  %v1729 = vmul.f32 %v1418, %v1418
  %v1730 = vmul.f32 %v1420, %v1420
  %v1731 = vmul.f32 %v1489, %v1489
  %v1732 = vmul.f32 %v1491, %v1491
  %v1733 = vmul.f32 %v1560, %v1560
  %v1734 = vmul.f32 %v1562, %v1562
  %v1735 = vmul.f32 %v1631, %v1631
  %v1736 = vmul.f32 %v1633, %v1633
  %v1737 = vmul.f32 %v1702, %v1702
  %v1738 = vmul.f32 %v1704, %v1704
  %v1739 = vadd.f32 %v1723, %v1724
  %v1740 = vadd.f32 %v1739, %v1725
  %v1741 = vadd.f32 %v1740, %v1726
  %v1742 = vadd.f32 %v1741, %v1727
  %v1743 = vadd.f32 %v1742, %v1728
  %v1744 = vadd.f32 %v1743, %v1729
  %v1745 = vadd.f32 %v1744, %v1730
  %v1746 = vadd.f32 %v1745, %v1731
  %v1747 = vadd.f32 %v1746, %v1732
  %v1748 = vadd.f32 %v1747, %v1733
  %v1749 = vadd.f32 %v1748, %v1734
  %v1750 = vadd.f32 %v1749, %v1735
  %v1751 = vadd.f32 %v1750, %v1736
  %v1752 = vadd.f32 %v1751, %v1737
  %v1753 = vadd.f32 %v1752, %v1738
  %1754 = vadd.xlane.f32.xlu0 %v1753
  %v1755 = vpop.xlane.xlu0 %1754
  %v1756 = vmul.f32 %v1722, 0.00048828125
  %v1757 = vmul.f32 %v1755, 0.00048828125
  %v1758 = vmul.f32 %v1756, %v1756
  %v1759 = vsub.f32 %v1757, %v1758
  %v1760 = vld [vmem:[%s11] sm:$0xff]
  %v1761 = vadd.f32 %v1759, 1e-05
  %v1762 = vrsqrt.pop %v1761
  %v1763 = vmul.f32 %v1760, %v1762
  %v1764 = vmul.f32 %v1756, %v1763
  %1766 = vrot.lane.b32.xlu0 %v1764, 1
  %v1767 = vpop.permute.xlu0 %1766
  %v1769 = vsub.f32 %v1760, %v1767
  %1771 = vset.pattern.permute.xlu0 0
  %1772 = vperm.xlu0 %1771, %v1763
  %v1773 = vpop.permute.xlu0 %1772
  %v1775 = vmul.f32 %v1205, %v1773
  %v1776 = vmul.f32 %v1207, %v1773
  %v1777 = vmul.f32 %v1276, %v1773
  %v1778 = vmul.f32 %v1278, %v1773
  %v1779 = vmul.f32 %v1347, %v1773
  %v1780 = vmul.f32 %v1349, %v1773
  %v1781 = vmul.f32 %v1418, %v1773
  %v1782 = vmul.f32 %v1420, %v1773
  %v1783 = vmul.f32 %v1489, %v1773
  %v1784 = vmul.f32 %v1491, %v1773
  %v1785 = vmul.f32 %v1560, %v1773
  %v1786 = vmul.f32 %v1562, %v1773
  %v1787 = vmul.f32 %v1631, %v1773
  %v1788 = vmul.f32 %v1633, %v1773
  %v1789 = vmul.f32 %v1702, %v1773
  %v1790 = vmul.f32 %v1704, %v1773
  %1792 = vset.pattern.permute.xlu0 1
  %1793 = vperm.xlu0 %1792, %v1769
  %v1794 = vpop.permute.xlu0 %1793
  %v1796 = vadd.f32 %v1775, %v1794
  %v1797 = vadd.f32 %v1776, %v1794
  %v1798 = vadd.f32 %v1777, %v1794
  %v1799 = vadd.f32 %v1778, %v1794
  %v1800 = vadd.f32 %v1779, %v1794
  %v1801 = vadd.f32 %v1780, %v1794
  %v1802 = vadd.f32 %v1781, %v1794
  %v1803 = vadd.f32 %v1782, %v1794
  %v1804 = vadd.f32 %v1783, %v1794
  %v1805 = vadd.f32 %v1784, %v1794
  %v1806 = vadd.f32 %v1785, %v1794
  %v1807 = vadd.f32 %v1786, %v1794
  %v1808 = vadd.f32 %v1787, %v1794
  %v1809 = vadd.f32 %v1788, %v1794
  %v1810 = vadd.f32 %v1789, %v1794
  %v1811 = vadd.f32 %v1790, %v1794
  %1812 = vst [vmem:[%s15] sm:$0xff] %v1796
  %1813 = vst [vmem:[%s15 + $0x8] sm:$0xff] %v1797
  %1814 = vst [vmem:[%s15 + $0x10] sm:$0xff] %v1798
  %1815 = vst [vmem:[%s15 + $0x18] sm:$0xff] %v1799
  %1816 = vst [vmem:[%s15 + $0x20] sm:$0xff] %v1800
  %1817 = vst [vmem:[%s15 + $0x28] sm:$0xff] %v1801
  %1818 = vst [vmem:[%s15 + $0x30] sm:$0xff] %v1802
  %1819 = vst [vmem:[%s15 + $0x38] sm:$0xff] %v1803
  %1820 = vst [vmem:[%s15 + $0x40] sm:$0xff] %v1804
  %1821 = vst [vmem:[%s15 + $0x48] sm:$0xff] %v1805
  %1822 = vst [vmem:[%s15 + $0x50] sm:$0xff] %v1806
  %1823 = vst [vmem:[%s15 + $0x58] sm:$0xff] %v1807
  %1824 = vst [vmem:[%s15 + $0x60] sm:$0xff] %v1808
  %1825 = vst [vmem:[%s15 + $0x68] sm:$0xff] %v1809
  %1826 = vst [vmem:[%s15 + $0x70] sm:$0xff] %v1810
  %1827 = vst [vmem:[%s15 + $0x78] sm:$0xff] %v1811
  // Predicated region
  $region50: #{_feature_extractor_forward.1} parent=0 // pred_check
    _
  $region51: #{_feature_extractor_forward.1} parent=0 // pred_check_branch
    %1829 = sbr.rel (0) target = $region53
  $region52: #{_feature_extractor_forward.1} parent=0 // pred_region
    _
  $region53: #{_feature_extractor_forward.1} parent=0 // pred_fallthru
    _
  // Predicated region
  $region54: #{_feature_extractor_forward.1} parent=0 // pred_check
    _
  $region55: #{_feature_extractor_forward.1} parent=0 // pred_check_branch
    %1831 = sbr.rel (0) target = $region57
  $region56: #{_feature_extractor_forward.1} parent=0 // pred_region
    _
  $region57: #{_feature_extractor_forward.1} parent=0 // pred_fallthru
    _
  // Predicated region
  $region58: #{_feature_extractor_forward.1} parent=0 // pred_check
    _
  $region59: #{_feature_extractor_forward.1} parent=0 // pred_check_branch
    %1833 = sbr.rel (0) target = $region61
  $region60: #{_feature_extractor_forward.1} parent=0 // pred_region
    _
  $region61: #{_feature_extractor_forward.1} parent=0 // pred_fallthru
    _
  // Predicated region
  $region62: #{_feature_extractor_forward.1} parent=0 // pred_check
    _
  $region63: #{_feature_extractor_forward.1} parent=0 // pred_check_branch
    %1835 = sbr.rel (0) target = $region65
  $region64: #{_feature_extractor_forward.1} parent=0 // pred_region
    _
  $region65: #{_feature_extractor_forward.1} parent=0 // pred_fallthru
    _
  // Predicated region
  $region66: #{_feature_extractor_forward.1} parent=0 // pred_check
    _
  $region67: #{_feature_extractor_forward.1} parent=0 // pred_check_branch
    %1837 = sbr.rel (0) target = $region69
  $region68: #{_feature_extractor_forward.1} parent=0 // pred_region
    _
  $region69: #{_feature_extractor_forward.1} parent=0 // pred_fallthru
    _
  // Predicated region
  $region70: #{_feature_extractor_forward.1} parent=0 // pred_check
    _
  $region71: #{_feature_extractor_forward.1} parent=0 // pred_check_branch
    %1839 = sbr.rel (0) target = $region73
  $region72: #{_feature_extractor_forward.1} parent=0 // pred_region
    _
  $region73: #{_feature_extractor_forward.1} parent=0 // pred_fallthru
    _
  // Predicated region
  $region74: #{_feature_extractor_forward.1} parent=0 // pred_check
    _
  $region75: #{_feature_extractor_forward.1} parent=0 // pred_check_branch
    %1841 = sbr.rel (0) target = $region77
  $region76: #{_feature_extractor_forward.1} parent=0 // pred_region
    _
  $region77: #{_feature_extractor_forward.1} parent=0 // pred_fallthru
    _
  // Predicated region
  $region78: #{_feature_extractor_forward.1} parent=0 // pred_check
    _
  $region79: #{_feature_extractor_forward.1} parent=0 // pred_check_branch
    %1843 = sbr.rel (0) target = $region81
  $region80: #{_feature_extractor_forward.1} parent=0 // pred_region
    _
  $region81: #{_feature_extractor_forward.1} parent=0 // pred_fallthru
    _

</llo_original>
